<compile_context>
chip_gen: v7x
topology: tpu7x:2x2x1
jax: 0.10.0
libtpu: 0.0.40
codegen_flags: <defaults>
</compile_context>

<pallas_src>
import jax
import jax.numpy as jnp
from jax.experimental import pallas as pl
from jax.experimental.pallas import tpu as pltpu


def lstm_kernel(x_ref, wih0_ref, wihr_ref, whh_ref, b_ref, wfc_ref, bfc_ref,
                o_ref, hs_ref):
    # x_ref:    (Bblk, T)            f32   per-timestep scalar inputs (input_dim == 1)
    # wih0_ref: (1, 4H)              f32   layer-0 input->gates row (g-cols pre-scaled by 2)
    # wihr_ref: (max(L-1,1), H, 4H)  f32   layers 1..L-1 input->gates (transposed, g-scaled)
    # whh_ref:  (L, H, 4H)           f32   hidden->gates (transposed, g-scaled)
    # b_ref:    (L, 1, 4H)           f32   b_ih + b_hh (g-scaled)
    # wfc_ref:  (H, O)               f32
    # bfc_ref:  (1, O)               f32
    # o_ref:    (Bblk, O)            f32
    # hs_ref:   (T*Bblk, H)          f32   VMEM scratch: layer l's hidden sequence
    #                                      (t-major), feeding layer l+1's batched matmul
    Bb, T = x_ref.shape
    L, H, _ = whh_ref.shape

    # ---- layer 0 input->gates: ONE broadcast op over the whole sequence ------------
    # input_dim == 1, so the projection is a scalar * weight-row broadcast; bias folded
    # in here once.  Off the recurrent critical path.
    w0 = wih0_ref[...]                                     # (1, 4H)
    b0 = b_ref[0]                                          # (1, 4H)
    xw = x_ref[...][:, :, None] * w0[None, :, :] + b0[None, :, :]   # (Bb, T, 4H)

    h = jnp.zeros((Bb, H), jnp.float32)
    for l in range(L):                                     # static unroll over layers
        if l == 0:
            get_pre = lambda t: xw[:, t, :]                # (Bb, 4H) per step
        else:
            # Batched input projection for layer l: ONE (T*Bb,H)@(H,4H) MXU matmul over
            # the previous layer's full hidden sequence (contiguous read from scratch),
            # bias folded in once per layer.
            pall = jnp.dot(hs_ref[...], wihr_ref[l - 1],
                           preferred_element_type=jnp.float32) + b_ref[l]   # (T*Bb, 4H)
            get_pre = lambda t, p=pall: p[t * Bb:(t + 1) * Bb, :]

        whh_l = whh_ref[l]                                 # (H, 4H); loop-invariant RHS
        h = jnp.zeros((Bb, H), jnp.float32)                # SSA-carried, stays in vregs
        c = jnp.zeros((Bb, H), jnp.float32)
        last_layer = (l == L - 1)
        # T is small: static unroll.  For long sequences switch to lax.fori_loop.
        for t in range(T):
            gates = jnp.dot(h, whh_l,
                            preferred_element_type=jnp.float32) + get_pre(t)  # (Bb, 4H)
            sg = jax.nn.sigmoid(gates)                     # ONE EUP pass over full tile
            i_g = sg[:, 0 * H:1 * H]
            f_g = sg[:, 1 * H:2 * H]
            g_g = 2.0 * sg[:, 2 * H:3 * H] - 1.0           # tanh(z) = 2*sigmoid(2z) - 1
            o_g = sg[:, 3 * H:4 * H]
            c = f_g * c + i_g * g_g
            h = o_g * jnp.tanh(c)
            if not last_layer:
                hs_ref[t * Bb:(t + 1) * Bb, :] = h         # t-major hidden sequence

    # final Linear on the last timestep's top-layer hidden state
    out = jnp.dot(h, wfc_ref[...],
                  preferred_element_type=jnp.float32) + bfc_ref[...]
    o_ref[...] = out.astype(o_ref.dtype)


def init_params(key, input_dim, hidden_dim, output_dim, num_layers):
    """Raw PyTorch-layout parameters, default init U(-1/sqrt(H), 1/sqrt(H))."""
    H, L, O = hidden_dim, num_layers, output_dim
    k = 1.0 / jnp.sqrt(jnp.float32(H))
    keys = jax.random.split(key, 4 * L + 2)
    raw = {"w_ih": [], "w_hh": [], "b_ih": [], "b_hh": []}
    for l in range(L):
        in_dim = input_dim if l == 0 else H
        raw["w_ih"].append(jax.random.uniform(keys[4 * l + 0], (4 * H, in_dim),
                                              jnp.float32, -k, k))
        raw["w_hh"].append(jax.random.uniform(keys[4 * l + 1], (4 * H, H),
                                              jnp.float32, -k, k))
        raw["b_ih"].append(jax.random.uniform(keys[4 * l + 2], (4 * H,),
                                              jnp.float32, -k, k))
        raw["b_hh"].append(jax.random.uniform(keys[4 * l + 3], (4 * H,),
                                              jnp.float32, -k, k))
    raw["w_fc"] = jax.random.uniform(keys[-2], (O, H), jnp.float32, -k, k)
    raw["b_fc"] = jax.random.uniform(keys[-1], (O,), jnp.float32, -k, k)
    return raw


def pack_params(raw, input_dim, hidden_dim, num_layers):
    """Kernel layout: transposed weights, combined bias, g-gate columns pre-scaled by 2
    (so a single sigmoid over the full gate tile can be used; g = 2*sig - 1)."""
    assert input_dim == 1, "LSTMModel.forward views x as (B, T, 1)"
    H, L = hidden_dim, num_layers

    def scale_g(w):           # rows [2H:3H] are the g-gate rows in PyTorch order [i,f,g,o]
        return w.at[2 * H:3 * H].multiply(2.0)

    w_ih0_t = scale_g(raw["w_ih"][0]).T                    # (1, 4H)
    wih_rest = [scale_g(raw["w_ih"][l]).T for l in range(1, L)]   # each (H, 4H)
    if not wih_rest:                                       # keep a non-empty array for L == 1
        wih_rest = [jnp.zeros((H, 4 * H), jnp.float32)]
    whh = [scale_g(raw["w_hh"][l]).T for l in range(L)]
    bias = [scale_g(raw["b_ih"][l] + raw["b_hh"][l])[None, :] for l in range(L)]

    return dict(
        w_ih0=w_ih0_t,                                     # (1, 4H)
        w_ih_rest=jnp.stack(wih_rest),                     # (max(L-1,1), H, 4H)
        w_hh=jnp.stack(whh),                               # (L, H, 4H)
        bias=jnp.stack(bias),                              # (L, 1, 4H)
        w_fc=raw["w_fc"].T,                                # (H, O)
        b_fc=raw["b_fc"][None, :],                         # (1, O)
    )


def lstm_model_forward(x, params, hidden_dim, num_layers, batch_block=None):
    B, T = x.shape
    H, L = hidden_dim, num_layers
    O = params["w_fc"].shape[1]
    LR = params["w_ih_rest"].shape[0]

    # batch_block must equal B (single grid step, small batches) or be an 8-aligned
    # divisor of B (full sublanes, legal (8,128) block tiling).  With >= 2 grid steps
    # the "parallel" batch axis shards across both v7x TensorCores.
    if batch_block is None:
        batch_block = 8 if (B >= 16 and B % 8 == 0) else B
    assert batch_block == B or (batch_block % 8 == 0 and B % batch_block == 0), (
        "batch_block must equal B or be an 8-aligned divisor of B")
    grid = (pl.cdiv(B, batch_block),)

    # VMEM guard: weights are replicated to every grid step and double-buffered by the
    # pipeline; raise the scoped VMEM cap before this would overflow v7x's 32 MiB default.
    weight_bytes = 4 * (4 * H + LR * H * 4 * H + L * H * 4 * H + L * 4 * H + H * O + O)
    act_bytes = 4 * (batch_block * T + batch_block * O) + 4 * (T * batch_block * H)
    est_vmem = 2 * (weight_bytes + act_bytes)
    cp_kwargs = dict(dimension_semantics=("parallel",))    # batch shards across TCs on v7x
    if est_vmem > 24 * 1024 * 1024:
        cp_kwargs["vmem_limit_bytes"] = min(2 * est_vmem, 100 * 1024 * 1024)

    return pl.pallas_call(
        lstm_kernel,
        out_shape=jax.ShapeDtypeStruct((B, O), jnp.float32),
        grid_spec=pltpu.PrefetchScalarGridSpec(
            num_scalar_prefetch=0,
            grid=grid,
            in_specs=[
                pl.BlockSpec((batch_block, T), lambda i: (i, 0)),      # x (blocked on batch)
                pl.BlockSpec((1, 4 * H), lambda i: (0, 0)),            # w_ih0
                pl.BlockSpec((LR, H, 4 * H), lambda i: (0, 0, 0)),     # w_ih layers 1..L-1
                pl.BlockSpec((L, H, 4 * H), lambda i: (0, 0, 0)),      # w_hh
                pl.BlockSpec((L, 1, 4 * H), lambda i: (0, 0, 0)),      # bias
                pl.BlockSpec((H, O), lambda i: (0, 0)),                # w_fc
                pl.BlockSpec((1, O), lambda i: (0, 0)),                # b_fc
            ],
            out_specs=pl.BlockSpec((batch_block, O), lambda i: (i, 0)),
            scratch_shapes=[pltpu.VMEM((T * batch_block, H), jnp.float32)],
        ),
        compiler_params=pltpu.CompilerParams(**cp_kwargs),
    )(x, params["w_ih0"], params["w_ih_rest"], params["w_hh"],
      params["bias"], params["w_fc"], params["b_fc"])


def lstm_model_reference(x, raw, hidden_dim, num_layers):
    """Pure-JAX reference with PyTorch LSTM semantics (for verification)."""
    B, T = x.shape
    H, L = hidden_dim, num_layers
    layer_in = x[:, :, None]                               # (B, T, 1)
    for l in range(L):
        w_ih, w_hh = raw["w_ih"][l], raw["w_hh"][l]
        b = raw["b_ih"][l] + raw["b_hh"][l]
        h = jnp.zeros((B, H), jnp.float32)
        c = jnp.zeros((B, H), jnp.float32)
        outs = []
        for t in range(T):
            gates = layer_in[:, t, :] @ w_ih.T + h @ w_hh.T + b
            i_g = jax.nn.sigmoid(gates[:, 0 * H:1 * H])
            f_g = jax.nn.sigmoid(gates[:, 1 * H:2 * H])
            g_g = jnp.tanh(gates[:, 2 * H:3 * H])
            o_g = jax.nn.sigmoid(gates[:, 3 * H:4 * H])
            c = f_g * c + i_g * g_g
            h = o_g * jnp.tanh(c)
            outs.append(h)
        layer_in = jnp.stack(outs, axis=1)                 # (B, T, H)
    return layer_in[:, -1, :] @ raw["w_fc"].T + raw["b_fc"][None, :]


if __name__ == "__main__":
    # small shapes consistent with the module's forward: x is (batch, seq), input_dim == 1
    batch, seq = 2, 8
    input_dim, hidden_dim, output_dim, num_layers = 1, 32, 4, 2

    key = jax.random.PRNGKey(0)
    kx, kp = jax.random.split(key)
    x = jax.random.normal(kx, (batch, seq), jnp.float32)

    raw = init_params(kp, input_dim, hidden_dim, output_dim, num_layers)
    params = pack_params(raw, input_dim, hidden_dim, num_layers)

    out = lstm_model_forward(x, params, hidden_dim, num_layers)
    out = jax.block_until_ready(out)

    ref = lstm_model_reference(x, raw, hidden_dim, num_layers)
    assert out.shape == (batch, output_dim)
    assert jnp.allclose(out, ref, rtol=1e-4, atol=1e-4), (out, ref)

    print("KERNEL_OK")
</pallas_src>

<mosaic_0001>
module attributes {stable_mosaic.version = 11 : i64} {
  func.func @lstm_kernel(%arg0: i32, %arg1: memref<2x8xf32, #tpu.memory_space<vmem>>, %arg2: memref<1x128xf32, #tpu.memory_space<vmem>>, %arg3: memref<1x32x128xf32, #tpu.memory_space<vmem>>, %arg4: memref<2x32x128xf32, #tpu.memory_space<vmem>>, %arg5: memref<2x1x128xf32, #tpu.memory_space<vmem>>, %arg6: memref<32x4xf32, #tpu.memory_space<vmem>>, %arg7: memref<1x4xf32, #tpu.memory_space<vmem>>, %arg8: memref<2x4xf32, #tpu.memory_space<vmem>>, %arg9: memref<16x32xf32, #tpu.memory_space<vmem>>) attributes {dimension_semantics = [#tpu.dimension_semantics<parallel>], iteration_bounds = array<i64: 1>, scalar_prefetch = 0 : i64, scratch_operands = 1 : i64, tpu.core_type = #tpu.core_type<tc>, window_params = [{transform_indices = @transform_0, window_bounds = array<i64: 2, 8>}, {pipeline_mode = #tpu.pipeline_mode<synchronous>, transform_indices = @transform_1, window_bounds = array<i64: 1, 128>}, {pipeline_mode = #tpu.pipeline_mode<synchronous>, transform_indices = @transform_2, window_bounds = array<i64: 1, 32, 128>}, {pipeline_mode = #tpu.pipeline_mode<synchronous>, transform_indices = @transform_3, window_bounds = array<i64: 2, 32, 128>}, {pipeline_mode = #tpu.pipeline_mode<synchronous>, transform_indices = @transform_4, window_bounds = array<i64: 2, 1, 128>}, {pipeline_mode = #tpu.pipeline_mode<synchronous>, transform_indices = @transform_5, window_bounds = array<i64: 32, 4>}, {pipeline_mode = #tpu.pipeline_mode<synchronous>, transform_indices = @transform_6, window_bounds = array<i64: 1, 4>}, {transform_indices = @transform_7, window_bounds = array<i64: 2, 4>}]} {
    %c0 = arith.constant 0 : index
    %c0_0 = arith.constant 0 : index
    %0 = vector.load %arg2[%c0, %c0_0] : memref<1x128xf32, #tpu.memory_space<vmem>>, vector<1x128xf32>
    %c0_1 = arith.constant 0 : index
    %c0_2 = arith.constant 0 : index
    %c0_3 = arith.constant 0 : index
    %1 = vector.load %arg5[%c0_1, %c0_2, %c0_3] : memref<2x1x128xf32, #tpu.memory_space<vmem>>, vector<1x1x128xf32>
    %2 = vector.shape_cast %1 : vector<1x1x128xf32> to vector<1x128xf32>
    %c0_4 = arith.constant 0 : index
    %c0_5 = arith.constant 0 : index
    %3 = vector.load %arg1[%c0_4, %c0_5] : memref<2x8xf32, #tpu.memory_space<vmem>>, vector<2x8xf32>
    %4 = vector.shape_cast %3 : vector<2x8xf32> to vector<2x8x1xf32>
    %5 = vector.shape_cast %0 : vector<1x128xf32> to vector<1x1x128xf32>
    %6 = vector.broadcast %4 : vector<2x8x1xf32> to vector<2x8x128xf32>
    %7 = vector.broadcast %5 : vector<1x1x128xf32> to vector<2x8x128xf32>
    %8 = arith.mulf %6, %7 : vector<2x8x128xf32>
    %9 = vector.shape_cast %2 : vector<1x128xf32> to vector<1x1x128xf32>
    %10 = vector.broadcast %9 : vector<1x1x128xf32> to vector<2x8x128xf32>
    %11 = arith.addf %8, %10 : vector<2x8x128xf32>
    %c0_6 = arith.constant 0 : index
    %c0_7 = arith.constant 0 : index
    %c0_8 = arith.constant 0 : index
    %12 = vector.load %arg4[%c0_6, %c0_7, %c0_8] : memref<2x32x128xf32, #tpu.memory_space<vmem>>, vector<1x32x128xf32>
    %13 = vector.shape_cast %12 : vector<1x32x128xf32> to vector<32x128xf32>
    %cst = arith.constant 0.000000e+00 : f32
    %14 = vector.broadcast %cst : f32 to vector<2x32xf32>
    %cst_9 = arith.constant 0.000000e+00 : f32
    %15 = vector.broadcast %cst_9 : f32 to vector<2x32xf32>
    %cst_10 = arith.constant dense<0.000000e+00> : vector<2x128xf32>
    %16 = tpu.matmul %14, %13, %cst_10 {dimension_numbers = #tpu.dot_dimension_numbers<[1], [0], [0], [1], [0, 0, 1, 1], [], []>} : vector<2x32xf32>, vector<32x128xf32>, vector<2x128xf32> -> vector<2x128xf32>
    %17 = vector.extract_strided_slice %11 {offsets = [0, 0, 0], sizes = [2, 1, 128], strides = [1, 1, 1]} : vector<2x8x128xf32> to vector<2x1x128xf32>
    %18 = vector.shape_cast %17 : vector<2x1x128xf32> to vector<2x128xf32>
    %19 = arith.addf %16, %18 : vector<2x128xf32>
    %20 = arith.negf %19 : vector<2x128xf32>
    %21 = math.exp %20 : vector<2x128xf32>
    %cst_11 = arith.constant 1.000000e+00 : f32
    %22 = vector.broadcast %cst_11 : f32 to vector<2x128xf32>
    %23 = arith.addf %22, %21 : vector<2x128xf32>
    %24 = arith.divf %22, %23 : vector<2x128xf32>
    %25 = vector.extract_strided_slice %24 {offsets = [0, 0], sizes = [2, 32], strides = [1, 1]} : vector<2x128xf32> to vector<2x32xf32>
    %26 = vector.extract_strided_slice %24 {offsets = [0, 32], sizes = [2, 32], strides = [1, 1]} : vector<2x128xf32> to vector<2x32xf32>
    %27 = vector.extract_strided_slice %24 {offsets = [0, 64], sizes = [2, 32], strides = [1, 1]} : vector<2x128xf32> to vector<2x32xf32>
    %cst_12 = arith.constant 2.000000e+00 : f32
    %28 = vector.broadcast %cst_12 : f32 to vector<2x32xf32>
    %29 = arith.mulf %28, %27 : vector<2x32xf32>
    %cst_13 = arith.constant 1.000000e+00 : f32
    %30 = vector.broadcast %cst_13 : f32 to vector<2x32xf32>
    %31 = arith.subf %29, %30 : vector<2x32xf32>
    %32 = vector.extract_strided_slice %24 {offsets = [0, 96], sizes = [2, 32], strides = [1, 1]} : vector<2x128xf32> to vector<2x32xf32>
    %33 = arith.mulf %26, %15 : vector<2x32xf32>
    %34 = arith.mulf %25, %31 : vector<2x32xf32>
    %35 = arith.addf %33, %34 : vector<2x32xf32>
    %36 = math.tanh %35 : vector<2x32xf32>
    %37 = arith.mulf %32, %36 : vector<2x32xf32>
    %c0_14 = arith.constant 0 : index
    %c0_15 = arith.constant 0 : index
    %38 = vector.load %arg9[%c0_14, %c0_15] : memref<16x32xf32, #tpu.memory_space<vmem>>, vector<2x32xf32>
    tpu.vector_store %arg9[%c0_14, %c0_15], %37 {strides = array<i32>} : memref<16x32xf32, #tpu.memory_space<vmem>>, vector<2x32xf32>,
    %cst_16 = arith.constant dense<0.000000e+00> : vector<2x128xf32>
    %39 = tpu.matmul %37, %13, %cst_16 {dimension_numbers = #tpu.dot_dimension_numbers<[1], [0], [0], [1], [0, 0, 1, 1], [], []>} : vector<2x32xf32>, vector<32x128xf32>, vector<2x128xf32> -> vector<2x128xf32>
    %40 = vector.extract_strided_slice %11 {offsets = [0, 1, 0], sizes = [2, 1, 128], strides = [1, 1, 1]} : vector<2x8x128xf32> to vector<2x1x128xf32>
    %41 = vector.shape_cast %40 : vector<2x1x128xf32> to vector<2x128xf32>
    %42 = arith.addf %39, %41 : vector<2x128xf32>
    %43 = arith.negf %42 : vector<2x128xf32>
    %44 = math.exp %43 : vector<2x128xf32>
    %cst_17 = arith.constant 1.000000e+00 : f32
    %45 = vector.broadcast %cst_17 : f32 to vector<2x128xf32>
    %46 = arith.addf %45, %44 : vector<2x128xf32>
    %47 = arith.divf %45, %46 : vector<2x128xf32>
    %48 = vector.extract_strided_slice %47 {offsets = [0, 0], sizes = [2, 32], strides = [1, 1]} : vector<2x128xf32> to vector<2x32xf32>
    %49 = vector.extract_strided_slice %47 {offsets = [0, 32], sizes = [2, 32], strides = [1, 1]} : vector<2x128xf32> to vector<2x32xf32>
    %50 = vector.extract_strided_slice %47 {offsets = [0, 64], sizes = [2, 32], strides = [1, 1]} : vector<2x128xf32> to vector<2x32xf32>
    %cst_18 = arith.constant 2.000000e+00 : f32
    %51 = vector.broadcast %cst_18 : f32 to vector<2x32xf32>
    %52 = arith.mulf %51, %50 : vector<2x32xf32>
    %cst_19 = arith.constant 1.000000e+00 : f32
    %53 = vector.broadcast %cst_19 : f32 to vector<2x32xf32>
    %54 = arith.subf %52, %53 : vector<2x32xf32>
    %55 = vector.extract_strided_slice %47 {offsets = [0, 96], sizes = [2, 32], strides = [1, 1]} : vector<2x128xf32> to vector<2x32xf32>
    %56 = arith.mulf %49, %35 : vector<2x32xf32>
    %57 = arith.mulf %48, %54 : vector<2x32xf32>
    %58 = arith.addf %56, %57 : vector<2x32xf32>
    %59 = math.tanh %58 : vector<2x32xf32>
    %60 = arith.mulf %55, %59 : vector<2x32xf32>
    %c2 = arith.constant 2 : index
    %c0_20 = arith.constant 0 : index
    %61 = vector.load %arg9[%c2, %c0_20] : memref<16x32xf32, #tpu.memory_space<vmem>>, vector<2x32xf32>
    tpu.vector_store %arg9[%c2, %c0_20], %60 {strides = array<i32>} : memref<16x32xf32, #tpu.memory_space<vmem>>, vector<2x32xf32>,
    %cst_21 = arith.constant dense<0.000000e+00> : vector<2x128xf32>
    %62 = tpu.matmul %60, %13, %cst_21 {dimension_numbers = #tpu.dot_dimension_numbers<[1], [0], [0], [1], [0, 0, 1, 1], [], []>} : vector<2x32xf32>, vector<32x128xf32>, vector<2x128xf32> -> vector<2x128xf32>
    %63 = vector.extract_strided_slice %11 {offsets = [0, 2, 0], sizes = [2, 1, 128], strides = [1, 1, 1]} : vector<2x8x128xf32> to vector<2x1x128xf32>
    %64 = vector.shape_cast %63 : vector<2x1x128xf32> to vector<2x128xf32>
    %65 = arith.addf %62, %64 : vector<2x128xf32>
    %66 = arith.negf %65 : vector<2x128xf32>
    %67 = math.exp %66 : vector<2x128xf32>
    %cst_22 = arith.constant 1.000000e+00 : f32
    %68 = vector.broadcast %cst_22 : f32 to vector<2x128xf32>
    %69 = arith.addf %68, %67 : vector<2x128xf32>
    %70 = arith.divf %68, %69 : vector<2x128xf32>
    %71 = vector.extract_strided_slice %70 {offsets = [0, 0], sizes = [2, 32], strides = [1, 1]} : vector<2x128xf32> to vector<2x32xf32>
    %72 = vector.extract_strided_slice %70 {offsets = [0, 32], sizes = [2, 32], strides = [1, 1]} : vector<2x128xf32> to vector<2x32xf32>
    %73 = vector.extract_strided_slice %70 {offsets = [0, 64], sizes = [2, 32], strides = [1, 1]} : vector<2x128xf32> to vector<2x32xf32>
    %cst_23 = arith.constant 2.000000e+00 : f32
    %74 = vector.broadcast %cst_23 : f32 to vector<2x32xf32>
    %75 = arith.mulf %74, %73 : vector<2x32xf32>
    %cst_24 = arith.constant 1.000000e+00 : f32
    %76 = vector.broadcast %cst_24 : f32 to vector<2x32xf32>
    %77 = arith.subf %75, %76 : vector<2x32xf32>
    %78 = vector.extract_strided_slice %70 {offsets = [0, 96], sizes = [2, 32], strides = [1, 1]} : vector<2x128xf32> to vector<2x32xf32>
    %79 = arith.mulf %72, %58 : vector<2x32xf32>
    %80 = arith.mulf %71, %77 : vector<2x32xf32>
    %81 = arith.addf %79, %80 : vector<2x32xf32>
    %82 = math.tanh %81 : vector<2x32xf32>
    %83 = arith.mulf %78, %82 : vector<2x32xf32>
    %c4 = arith.constant 4 : index
    %c0_25 = arith.constant 0 : index
    %84 = vector.load %arg9[%c4, %c0_25] : memref<16x32xf32, #tpu.memory_space<vmem>>, vector<2x32xf32>
    tpu.vector_store %arg9[%c4, %c0_25], %83 {strides = array<i32>} : memref<16x32xf32, #tpu.memory_space<vmem>>, vector<2x32xf32>,
    %cst_26 = arith.constant dense<0.000000e+00> : vector<2x128xf32>
    %85 = tpu.matmul %83, %13, %cst_26 {dimension_numbers = #tpu.dot_dimension_numbers<[1], [0], [0], [1], [0, 0, 1, 1], [], []>} : vector<2x32xf32>, vector<32x128xf32>, vector<2x128xf32> -> vector<2x128xf32>
    %86 = vector.extract_strided_slice %11 {offsets = [0, 3, 0], sizes = [2, 1, 128], strides = [1, 1, 1]} : vector<2x8x128xf32> to vector<2x1x128xf32>
    %87 = vector.shape_cast %86 : vector<2x1x128xf32> to vector<2x128xf32>
    %88 = arith.addf %85, %87 : vector<2x128xf32>
    %89 = arith.negf %88 : vector<2x128xf32>
    %90 = math.exp %89 : vector<2x128xf32>
    %cst_27 = arith.constant 1.000000e+00 : f32
    %91 = vector.broadcast %cst_27 : f32 to vector<2x128xf32>
    %92 = arith.addf %91, %90 : vector<2x128xf32>
    %93 = arith.divf %91, %92 : vector<2x128xf32>
    %94 = vector.extract_strided_slice %93 {offsets = [0, 0], sizes = [2, 32], strides = [1, 1]} : vector<2x128xf32> to vector<2x32xf32>
    %95 = vector.extract_strided_slice %93 {offsets = [0, 32], sizes = [2, 32], strides = [1, 1]} : vector<2x128xf32> to vector<2x32xf32>
    %96 = vector.extract_strided_slice %93 {offsets = [0, 64], sizes = [2, 32], strides = [1, 1]} : vector<2x128xf32> to vector<2x32xf32>
    %cst_28 = arith.constant 2.000000e+00 : f32
    %97 = vector.broadcast %cst_28 : f32 to vector<2x32xf32>
    %98 = arith.mulf %97, %96 : vector<2x32xf32>
    %cst_29 = arith.constant 1.000000e+00 : f32
    %99 = vector.broadcast %cst_29 : f32 to vector<2x32xf32>
    %100 = arith.subf %98, %99 : vector<2x32xf32>
    %101 = vector.extract_strided_slice %93 {offsets = [0, 96], sizes = [2, 32], strides = [1, 1]} : vector<2x128xf32> to vector<2x32xf32>
    %102 = arith.mulf %95, %81 : vector<2x32xf32>
    %103 = arith.mulf %94, %100 : vector<2x32xf32>
    %104 = arith.addf %102, %103 : vector<2x32xf32>
    %105 = math.tanh %104 : vector<2x32xf32>
    %106 = arith.mulf %101, %105 : vector<2x32xf32>
    %c6 = arith.constant 6 : index
    %c0_30 = arith.constant 0 : index
    %107 = vector.load %arg9[%c6, %c0_30] : memref<16x32xf32, #tpu.memory_space<vmem>>, vector<2x32xf32>
    tpu.vector_store %arg9[%c6, %c0_30], %106 {strides = array<i32>} : memref<16x32xf32, #tpu.memory_space<vmem>>, vector<2x32xf32>,
    %cst_31 = arith.constant dense<0.000000e+00> : vector<2x128xf32>
    %108 = tpu.matmul %106, %13, %cst_31 {dimension_numbers = #tpu.dot_dimension_numbers<[1], [0], [0], [1], [0, 0, 1, 1], [], []>} : vector<2x32xf32>, vector<32x128xf32>, vector<2x128xf32> -> vector<2x128xf32>
    %109 = vector.extract_strided_slice %11 {offsets = [0, 4, 0], sizes = [2, 1, 128], strides = [1, 1, 1]} : vector<2x8x128xf32> to vector<2x1x128xf32>
    %110 = vector.shape_cast %109 : vector<2x1x128xf32> to vector<2x128xf32>
    %111 = arith.addf %108, %110 : vector<2x128xf32>
    %112 = arith.negf %111 : vector<2x128xf32>
    %113 = math.exp %112 : vector<2x128xf32>
    %cst_32 = arith.constant 1.000000e+00 : f32
    %114 = vector.broadcast %cst_32 : f32 to vector<2x128xf32>
    %115 = arith.addf %114, %113 : vector<2x128xf32>
    %116 = arith.divf %114, %115 : vector<2x128xf32>
    %117 = vector.extract_strided_slice %116 {offsets = [0, 0], sizes = [2, 32], strides = [1, 1]} : vector<2x128xf32> to vector<2x32xf32>
    %118 = vector.extract_strided_slice %116 {offsets = [0, 32], sizes = [2, 32], strides = [1, 1]} : vector<2x128xf32> to vector<2x32xf32>
    %119 = vector.extract_strided_slice %116 {offsets = [0, 64], sizes = [2, 32], strides = [1, 1]} : vector<2x128xf32> to vector<2x32xf32>
    %cst_33 = arith.constant 2.000000e+00 : f32
    %120 = vector.broadcast %cst_33 : f32 to vector<2x32xf32>
    %121 = arith.mulf %120, %119 : vector<2x32xf32>
    %cst_34 = arith.constant 1.000000e+00 : f32
    %122 = vector.broadcast %cst_34 : f32 to vector<2x32xf32>
    %123 = arith.subf %121, %122 : vector<2x32xf32>
    %124 = vector.extract_strided_slice %116 {offsets = [0, 96], sizes = [2, 32], strides = [1, 1]} : vector<2x128xf32> to vector<2x32xf32>
    %125 = arith.mulf %118, %104 : vector<2x32xf32>
    %126 = arith.mulf %117, %123 : vector<2x32xf32>
    %127 = arith.addf %125, %126 : vector<2x32xf32>
    %128 = math.tanh %127 : vector<2x32xf32>
    %129 = arith.mulf %124, %128 : vector<2x32xf32>
    %c8 = arith.constant 8 : index
    %c0_35 = arith.constant 0 : index
    %130 = vector.load %arg9[%c8, %c0_35] : memref<16x32xf32, #tpu.memory_space<vmem>>, vector<2x32xf32>
    tpu.vector_store %arg9[%c8, %c0_35], %129 {strides = array<i32>} : memref<16x32xf32, #tpu.memory_space<vmem>>, vector<2x32xf32>,
    %cst_36 = arith.constant dense<0.000000e+00> : vector<2x128xf32>
    %131 = tpu.matmul %129, %13, %cst_36 {dimension_numbers = #tpu.dot_dimension_numbers<[1], [0], [0], [1], [0, 0, 1, 1], [], []>} : vector<2x32xf32>, vector<32x128xf32>, vector<2x128xf32> -> vector<2x128xf32>
    %132 = vector.extract_strided_slice %11 {offsets = [0, 5, 0], sizes = [2, 1, 128], strides = [1, 1, 1]} : vector<2x8x128xf32> to vector<2x1x128xf32>
    %133 = vector.shape_cast %132 : vector<2x1x128xf32> to vector<2x128xf32>
    %134 = arith.addf %131, %133 : vector<2x128xf32>
    %135 = arith.negf %134 : vector<2x128xf32>
    %136 = math.exp %135 : vector<2x128xf32>
    %cst_37 = arith.constant 1.000000e+00 : f32
    %137 = vector.broadcast %cst_37 : f32 to vector<2x128xf32>
    %138 = arith.addf %137, %136 : vector<2x128xf32>
    %139 = arith.divf %137, %138 : vector<2x128xf32>
    %140 = vector.extract_strided_slice %139 {offsets = [0, 0], sizes = [2, 32], strides = [1, 1]} : vector<2x128xf32> to vector<2x32xf32>
    %141 = vector.extract_strided_slice %139 {offsets = [0, 32], sizes = [2, 32], strides = [1, 1]} : vector<2x128xf32> to vector<2x32xf32>
    %142 = vector.extract_strided_slice %139 {offsets = [0, 64], sizes = [2, 32], strides = [1, 1]} : vector<2x128xf32> to vector<2x32xf32>
    %cst_38 = arith.constant 2.000000e+00 : f32
    %143 = vector.broadcast %cst_38 : f32 to vector<2x32xf32>
    %144 = arith.mulf %143, %142 : vector<2x32xf32>
    %cst_39 = arith.constant 1.000000e+00 : f32
    %145 = vector.broadcast %cst_39 : f32 to vector<2x32xf32>
    %146 = arith.subf %144, %145 : vector<2x32xf32>
    %147 = vector.extract_strided_slice %139 {offsets = [0, 96], sizes = [2, 32], strides = [1, 1]} : vector<2x128xf32> to vector<2x32xf32>
    %148 = arith.mulf %141, %127 : vector<2x32xf32>
    %149 = arith.mulf %140, %146 : vector<2x32xf32>
    %150 = arith.addf %148, %149 : vector<2x32xf32>
    %151 = math.tanh %150 : vector<2x32xf32>
    %152 = arith.mulf %147, %151 : vector<2x32xf32>
    %c10 = arith.constant 10 : index
    %c0_40 = arith.constant 0 : index
    %153 = vector.load %arg9[%c10, %c0_40] : memref<16x32xf32, #tpu.memory_space<vmem>>, vector<2x32xf32>
    tpu.vector_store %arg9[%c10, %c0_40], %152 {strides = array<i32>} : memref<16x32xf32, #tpu.memory_space<vmem>>, vector<2x32xf32>,
    %cst_41 = arith.constant dense<0.000000e+00> : vector<2x128xf32>
    %154 = tpu.matmul %152, %13, %cst_41 {dimension_numbers = #tpu.dot_dimension_numbers<[1], [0], [0], [1], [0, 0, 1, 1], [], []>} : vector<2x32xf32>, vector<32x128xf32>, vector<2x128xf32> -> vector<2x128xf32>
    %155 = vector.extract_strided_slice %11 {offsets = [0, 6, 0], sizes = [2, 1, 128], strides = [1, 1, 1]} : vector<2x8x128xf32> to vector<2x1x128xf32>
    %156 = vector.shape_cast %155 : vector<2x1x128xf32> to vector<2x128xf32>
    %157 = arith.addf %154, %156 : vector<2x128xf32>
    %158 = arith.negf %157 : vector<2x128xf32>
    %159 = math.exp %158 : vector<2x128xf32>
    %cst_42 = arith.constant 1.000000e+00 : f32
    %160 = vector.broadcast %cst_42 : f32 to vector<2x128xf32>
    %161 = arith.addf %160, %159 : vector<2x128xf32>
    %162 = arith.divf %160, %161 : vector<2x128xf32>
    %163 = vector.extract_strided_slice %162 {offsets = [0, 0], sizes = [2, 32], strides = [1, 1]} : vector<2x128xf32> to vector<2x32xf32>
    %164 = vector.extract_strided_slice %162 {offsets = [0, 32], sizes = [2, 32], strides = [1, 1]} : vector<2x128xf32> to vector<2x32xf32>
    %165 = vector.extract_strided_slice %162 {offsets = [0, 64], sizes = [2, 32], strides = [1, 1]} : vector<2x128xf32> to vector<2x32xf32>
    %cst_43 = arith.constant 2.000000e+00 : f32
    %166 = vector.broadcast %cst_43 : f32 to vector<2x32xf32>
    %167 = arith.mulf %166, %165 : vector<2x32xf32>
    %cst_44 = arith.constant 1.000000e+00 : f32
    %168 = vector.broadcast %cst_44 : f32 to vector<2x32xf32>
    %169 = arith.subf %167, %168 : vector<2x32xf32>
    %170 = vector.extract_strided_slice %162 {offsets = [0, 96], sizes = [2, 32], strides = [1, 1]} : vector<2x128xf32> to vector<2x32xf32>
    %171 = arith.mulf %164, %150 : vector<2x32xf32>
    %172 = arith.mulf %163, %169 : vector<2x32xf32>
    %173 = arith.addf %171, %172 : vector<2x32xf32>
    %174 = math.tanh %173 : vector<2x32xf32>
    %175 = arith.mulf %170, %174 : vector<2x32xf32>
    %c12 = arith.constant 12 : index
    %c0_45 = arith.constant 0 : index
    %176 = vector.load %arg9[%c12, %c0_45] : memref<16x32xf32, #tpu.memory_space<vmem>>, vector<2x32xf32>
    tpu.vector_store %arg9[%c12, %c0_45], %175 {strides = array<i32>} : memref<16x32xf32, #tpu.memory_space<vmem>>, vector<2x32xf32>,
    %cst_46 = arith.constant dense<0.000000e+00> : vector<2x128xf32>
    %177 = tpu.matmul %175, %13, %cst_46 {dimension_numbers = #tpu.dot_dimension_numbers<[1], [0], [0], [1], [0, 0, 1, 1], [], []>} : vector<2x32xf32>, vector<32x128xf32>, vector<2x128xf32> -> vector<2x128xf32>
    %178 = vector.extract_strided_slice %11 {offsets = [0, 7, 0], sizes = [2, 1, 128], strides = [1, 1, 1]} : vector<2x8x128xf32> to vector<2x1x128xf32>
    %179 = vector.shape_cast %178 : vector<2x1x128xf32> to vector<2x128xf32>
    %180 = arith.addf %177, %179 : vector<2x128xf32>
    %181 = arith.negf %180 : vector<2x128xf32>
    %182 = math.exp %181 : vector<2x128xf32>
    %cst_47 = arith.constant 1.000000e+00 : f32
    %183 = vector.broadcast %cst_47 : f32 to vector<2x128xf32>
    %184 = arith.addf %183, %182 : vector<2x128xf32>
    %185 = arith.divf %183, %184 : vector<2x128xf32>
    %186 = vector.extract_strided_slice %185 {offsets = [0, 0], sizes = [2, 32], strides = [1, 1]} : vector<2x128xf32> to vector<2x32xf32>
    %187 = vector.extract_strided_slice %185 {offsets = [0, 32], sizes = [2, 32], strides = [1, 1]} : vector<2x128xf32> to vector<2x32xf32>
    %188 = vector.extract_strided_slice %185 {offsets = [0, 64], sizes = [2, 32], strides = [1, 1]} : vector<2x128xf32> to vector<2x32xf32>
    %cst_48 = arith.constant 2.000000e+00 : f32
    %189 = vector.broadcast %cst_48 : f32 to vector<2x32xf32>
    %190 = arith.mulf %189, %188 : vector<2x32xf32>
    %cst_49 = arith.constant 1.000000e+00 : f32
    %191 = vector.broadcast %cst_49 : f32 to vector<2x32xf32>
    %192 = arith.subf %190, %191 : vector<2x32xf32>
    %193 = vector.extract_strided_slice %185 {offsets = [0, 96], sizes = [2, 32], strides = [1, 1]} : vector<2x128xf32> to vector<2x32xf32>
    %194 = arith.mulf %187, %173 : vector<2x32xf32>
    %195 = arith.mulf %186, %192 : vector<2x32xf32>
    %196 = arith.addf %194, %195 : vector<2x32xf32>
    %197 = math.tanh %196 : vector<2x32xf32>
    %198 = arith.mulf %193, %197 : vector<2x32xf32>
    %c14 = arith.constant 14 : index
    %c0_50 = arith.constant 0 : index
    %199 = vector.load %arg9[%c14, %c0_50] : memref<16x32xf32, #tpu.memory_space<vmem>>, vector<2x32xf32>
    tpu.vector_store %arg9[%c14, %c0_50], %198 {strides = array<i32>} : memref<16x32xf32, #tpu.memory_space<vmem>>, vector<2x32xf32>,
    %c0_51 = arith.constant 0 : index
    %c0_52 = arith.constant 0 : index
    %200 = vector.load %arg9[%c0_51, %c0_52] : memref<16x32xf32, #tpu.memory_space<vmem>>, vector<16x32xf32>
    %c0_53 = arith.constant 0 : index
    %c0_54 = arith.constant 0 : index
    %c0_55 = arith.constant 0 : index
    %201 = vector.load %arg3[%c0_53, %c0_54, %c0_55] : memref<1x32x128xf32, #tpu.memory_space<vmem>>, vector<1x32x128xf32>
    %202 = vector.shape_cast %201 : vector<1x32x128xf32> to vector<32x128xf32>
    %cst_56 = arith.constant dense<0.000000e+00> : vector<16x128xf32>
    %203 = tpu.matmul %200, %202, %cst_56 {dimension_numbers = #tpu.dot_dimension_numbers<[1], [0], [0], [1], [0, 0, 1, 1], [], []>} : vector<16x32xf32>, vector<32x128xf32>, vector<16x128xf32> -> vector<16x128xf32>
    %c1 = arith.constant 1 : index
    %c0_57 = arith.constant 0 : index
    %c0_58 = arith.constant 0 : index
    %204 = vector.load %arg5[%c1, %c0_57, %c0_58] : memref<2x1x128xf32, #tpu.memory_space<vmem>>, vector<1x1x128xf32>
    %205 = vector.shape_cast %204 : vector<1x1x128xf32> to vector<1x128xf32>
    %206 = vector.broadcast %205 : vector<1x128xf32> to vector<16x128xf32>
    %207 = arith.addf %203, %206 : vector<16x128xf32>
    %c1_59 = arith.constant 1 : index
    %c0_60 = arith.constant 0 : index
    %c0_61 = arith.constant 0 : index
    %208 = vector.load %arg4[%c1_59, %c0_60, %c0_61] : memref<2x32x128xf32, #tpu.memory_space<vmem>>, vector<1x32x128xf32>
    %209 = vector.shape_cast %208 : vector<1x32x128xf32> to vector<32x128xf32>
    %cst_62 = arith.constant 0.000000e+00 : f32
    %210 = vector.broadcast %cst_62 : f32 to vector<2x32xf32>
    %cst_63 = arith.constant 0.000000e+00 : f32
    %211 = vector.broadcast %cst_63 : f32 to vector<2x32xf32>
    %cst_64 = arith.constant dense<0.000000e+00> : vector<2x128xf32>
    %212 = tpu.matmul %210, %209, %cst_64 {dimension_numbers = #tpu.dot_dimension_numbers<[1], [0], [0], [1], [0, 0, 1, 1], [], []>} : vector<2x32xf32>, vector<32x128xf32>, vector<2x128xf32> -> vector<2x128xf32>
    %213 = vector.extract_strided_slice %207 {offsets = [0, 0], sizes = [2, 128], strides = [1, 1]} : vector<16x128xf32> to vector<2x128xf32>
    %214 = arith.addf %212, %213 : vector<2x128xf32>
    %215 = arith.negf %214 : vector<2x128xf32>
    %216 = math.exp %215 : vector<2x128xf32>
    %cst_65 = arith.constant 1.000000e+00 : f32
    %217 = vector.broadcast %cst_65 : f32 to vector<2x128xf32>
    %218 = arith.addf %217, %216 : vector<2x128xf32>
    %219 = arith.divf %217, %218 : vector<2x128xf32>
    %220 = vector.extract_strided_slice %219 {offsets = [0, 0], sizes = [2, 32], strides = [1, 1]} : vector<2x128xf32> to vector<2x32xf32>
    %221 = vector.extract_strided_slice %219 {offsets = [0, 32], sizes = [2, 32], strides = [1, 1]} : vector<2x128xf32> to vector<2x32xf32>
    %222 = vector.extract_strided_slice %219 {offsets = [0, 64], sizes = [2, 32], strides = [1, 1]} : vector<2x128xf32> to vector<2x32xf32>
    %cst_66 = arith.constant 2.000000e+00 : f32
    %223 = vector.broadcast %cst_66 : f32 to vector<2x32xf32>
    %224 = arith.mulf %223, %222 : vector<2x32xf32>
    %cst_67 = arith.constant 1.000000e+00 : f32
    %225 = vector.broadcast %cst_67 : f32 to vector<2x32xf32>
    %226 = arith.subf %224, %225 : vector<2x32xf32>
    %227 = vector.extract_strided_slice %219 {offsets = [0, 96], sizes = [2, 32], strides = [1, 1]} : vector<2x128xf32> to vector<2x32xf32>
    %228 = arith.mulf %221, %211 : vector<2x32xf32>
    %229 = arith.mulf %220, %226 : vector<2x32xf32>
    %230 = arith.addf %228, %229 : vector<2x32xf32>
    %231 = math.tanh %230 : vector<2x32xf32>
    %232 = arith.mulf %227, %231 : vector<2x32xf32>
    %cst_68 = arith.constant dense<0.000000e+00> : vector<2x128xf32>
    %233 = tpu.matmul %232, %209, %cst_68 {dimension_numbers = #tpu.dot_dimension_numbers<[1], [0], [0], [1], [0, 0, 1, 1], [], []>} : vector<2x32xf32>, vector<32x128xf32>, vector<2x128xf32> -> vector<2x128xf32>
    %234 = vector.extract_strided_slice %207 {offsets = [2, 0], sizes = [2, 128], strides = [1, 1]} : vector<16x128xf32> to vector<2x128xf32>
    %235 = arith.addf %233, %234 : vector<2x128xf32>
    %236 = arith.negf %235 : vector<2x128xf32>
    %237 = math.exp %236 : vector<2x128xf32>
    %cst_69 = arith.constant 1.000000e+00 : f32
    %238 = vector.broadcast %cst_69 : f32 to vector<2x128xf32>
    %239 = arith.addf %238, %237 : vector<2x128xf32>
    %240 = arith.divf %238, %239 : vector<2x128xf32>
    %241 = vector.extract_strided_slice %240 {offsets = [0, 0], sizes = [2, 32], strides = [1, 1]} : vector<2x128xf32> to vector<2x32xf32>
    %242 = vector.extract_strided_slice %240 {offsets = [0, 32], sizes = [2, 32], strides = [1, 1]} : vector<2x128xf32> to vector<2x32xf32>
    %243 = vector.extract_strided_slice %240 {offsets = [0, 64], sizes = [2, 32], strides = [1, 1]} : vector<2x128xf32> to vector<2x32xf32>
    %cst_70 = arith.constant 2.000000e+00 : f32
    %244 = vector.broadcast %cst_70 : f32 to vector<2x32xf32>
    %245 = arith.mulf %244, %243 : vector<2x32xf32>
    %cst_71 = arith.constant 1.000000e+00 : f32
    %246 = vector.broadcast %cst_71 : f32 to vector<2x32xf32>
    %247 = arith.subf %245, %246 : vector<2x32xf32>
    %248 = vector.extract_strided_slice %240 {offsets = [0, 96], sizes = [2, 32], strides = [1, 1]} : vector<2x128xf32> to vector<2x32xf32>
    %249 = arith.mulf %242, %230 : vector<2x32xf32>
    %250 = arith.mulf %241, %247 : vector<2x32xf32>
    %251 = arith.addf %249, %250 : vector<2x32xf32>
    %252 = math.tanh %251 : vector<2x32xf32>
    %253 = arith.mulf %248, %252 : vector<2x32xf32>
    %cst_72 = arith.constant dense<0.000000e+00> : vector<2x128xf32>
    %254 = tpu.matmul %253, %209, %cst_72 {dimension_numbers = #tpu.dot_dimension_numbers<[1], [0], [0], [1], [0, 0, 1, 1], [], []>} : vector<2x32xf32>, vector<32x128xf32>, vector<2x128xf32> -> vector<2x128xf32>
    %255 = vector.extract_strided_slice %207 {offsets = [4, 0], sizes = [2, 128], strides = [1, 1]} : vector<16x128xf32> to vector<2x128xf32>
    %256 = arith.addf %254, %255 : vector<2x128xf32>
    %257 = arith.negf %256 : vector<2x128xf32>
    %258 = math.exp %257 : vector<2x128xf32>
    %cst_73 = arith.constant 1.000000e+00 : f32
    %259 = vector.broadcast %cst_73 : f32 to vector<2x128xf32>
    %260 = arith.addf %259, %258 : vector<2x128xf32>
    %261 = arith.divf %259, %260 : vector<2x128xf32>
    %262 = vector.extract_strided_slice %261 {offsets = [0, 0], sizes = [2, 32], strides = [1, 1]} : vector<2x128xf32> to vector<2x32xf32>
    %263 = vector.extract_strided_slice %261 {offsets = [0, 32], sizes = [2, 32], strides = [1, 1]} : vector<2x128xf32> to vector<2x32xf32>
    %264 = vector.extract_strided_slice %261 {offsets = [0, 64], sizes = [2, 32], strides = [1, 1]} : vector<2x128xf32> to vector<2x32xf32>
    %cst_74 = arith.constant 2.000000e+00 : f32
    %265 = vector.broadcast %cst_74 : f32 to vector<2x32xf32>
    %266 = arith.mulf %265, %264 : vector<2x32xf32>
    %cst_75 = arith.constant 1.000000e+00 : f32
    %267 = vector.broadcast %cst_75 : f32 to vector<2x32xf32>
    %268 = arith.subf %266, %267 : vector<2x32xf32>
    %269 = vector.extract_strided_slice %261 {offsets = [0, 96], sizes = [2, 32], strides = [1, 1]} : vector<2x128xf32> to vector<2x32xf32>
    %270 = arith.mulf %263, %251 : vector<2x32xf32>
    %271 = arith.mulf %262, %268 : vector<2x32xf32>
    %272 = arith.addf %270, %271 : vector<2x32xf32>
    %273 = math.tanh %272 : vector<2x32xf32>
    %274 = arith.mulf %269, %273 : vector<2x32xf32>
    %cst_76 = arith.constant dense<0.000000e+00> : vector<2x128xf32>
    %275 = tpu.matmul %274, %209, %cst_76 {dimension_numbers = #tpu.dot_dimension_numbers<[1], [0], [0], [1], [0, 0, 1, 1], [], []>} : vector<2x32xf32>, vector<32x128xf32>, vector<2x128xf32> -> vector<2x128xf32>
    %276 = vector.extract_strided_slice %207 {offsets = [6, 0], sizes = [2, 128], strides = [1, 1]} : vector<16x128xf32> to vector<2x128xf32>
    %277 = arith.addf %275, %276 : vector<2x128xf32>
    %278 = arith.negf %277 : vector<2x128xf32>
    %279 = math.exp %278 : vector<2x128xf32>
    %cst_77 = arith.constant 1.000000e+00 : f32
    %280 = vector.broadcast %cst_77 : f32 to vector<2x128xf32>
    %281 = arith.addf %280, %279 : vector<2x128xf32>
    %282 = arith.divf %280, %281 : vector<2x128xf32>
    %283 = vector.extract_strided_slice %282 {offsets = [0, 0], sizes = [2, 32], strides = [1, 1]} : vector<2x128xf32> to vector<2x32xf32>
    %284 = vector.extract_strided_slice %282 {offsets = [0, 32], sizes = [2, 32], strides = [1, 1]} : vector<2x128xf32> to vector<2x32xf32>
    %285 = vector.extract_strided_slice %282 {offsets = [0, 64], sizes = [2, 32], strides = [1, 1]} : vector<2x128xf32> to vector<2x32xf32>
    %cst_78 = arith.constant 2.000000e+00 : f32
    %286 = vector.broadcast %cst_78 : f32 to vector<2x32xf32>
    %287 = arith.mulf %286, %285 : vector<2x32xf32>
    %cst_79 = arith.constant 1.000000e+00 : f32
    %288 = vector.broadcast %cst_79 : f32 to vector<2x32xf32>
    %289 = arith.subf %287, %288 : vector<2x32xf32>
    %290 = vector.extract_strided_slice %282 {offsets = [0, 96], sizes = [2, 32], strides = [1, 1]} : vector<2x128xf32> to vector<2x32xf32>
    %291 = arith.mulf %284, %272 : vector<2x32xf32>
    %292 = arith.mulf %283, %289 : vector<2x32xf32>
    %293 = arith.addf %291, %292 : vector<2x32xf32>
    %294 = math.tanh %293 : vector<2x32xf32>
    %295 = arith.mulf %290, %294 : vector<2x32xf32>
    %cst_80 = arith.constant dense<0.000000e+00> : vector<2x128xf32>
    %296 = tpu.matmul %295, %209, %cst_80 {dimension_numbers = #tpu.dot_dimension_numbers<[1], [0], [0], [1], [0, 0, 1, 1], [], []>} : vector<2x32xf32>, vector<32x128xf32>, vector<2x128xf32> -> vector<2x128xf32>
    %297 = vector.extract_strided_slice %207 {offsets = [8, 0], sizes = [2, 128], strides = [1, 1]} : vector<16x128xf32> to vector<2x128xf32>
    %298 = arith.addf %296, %297 : vector<2x128xf32>
    %299 = arith.negf %298 : vector<2x128xf32>
    %300 = math.exp %299 : vector<2x128xf32>
    %cst_81 = arith.constant 1.000000e+00 : f32
    %301 = vector.broadcast %cst_81 : f32 to vector<2x128xf32>
    %302 = arith.addf %301, %300 : vector<2x128xf32>
    %303 = arith.divf %301, %302 : vector<2x128xf32>
    %304 = vector.extract_strided_slice %303 {offsets = [0, 0], sizes = [2, 32], strides = [1, 1]} : vector<2x128xf32> to vector<2x32xf32>
    %305 = vector.extract_strided_slice %303 {offsets = [0, 32], sizes = [2, 32], strides = [1, 1]} : vector<2x128xf32> to vector<2x32xf32>
    %306 = vector.extract_strided_slice %303 {offsets = [0, 64], sizes = [2, 32], strides = [1, 1]} : vector<2x128xf32> to vector<2x32xf32>
    %cst_82 = arith.constant 2.000000e+00 : f32
    %307 = vector.broadcast %cst_82 : f32 to vector<2x32xf32>
    %308 = arith.mulf %307, %306 : vector<2x32xf32>
    %cst_83 = arith.constant 1.000000e+00 : f32
    %309 = vector.broadcast %cst_83 : f32 to vector<2x32xf32>
    %310 = arith.subf %308, %309 : vector<2x32xf32>
    %311 = vector.extract_strided_slice %303 {offsets = [0, 96], sizes = [2, 32], strides = [1, 1]} : vector<2x128xf32> to vector<2x32xf32>
    %312 = arith.mulf %305, %293 : vector<2x32xf32>
    %313 = arith.mulf %304, %310 : vector<2x32xf32>
    %314 = arith.addf %312, %313 : vector<2x32xf32>
    %315 = math.tanh %314 : vector<2x32xf32>
    %316 = arith.mulf %311, %315 : vector<2x32xf32>
    %cst_84 = arith.constant dense<0.000000e+00> : vector<2x128xf32>
    %317 = tpu.matmul %316, %209, %cst_84 {dimension_numbers = #tpu.dot_dimension_numbers<[1], [0], [0], [1], [0, 0, 1, 1], [], []>} : vector<2x32xf32>, vector<32x128xf32>, vector<2x128xf32> -> vector<2x128xf32>
    %318 = vector.extract_strided_slice %207 {offsets = [10, 0], sizes = [2, 128], strides = [1, 1]} : vector<16x128xf32> to vector<2x128xf32>
    %319 = arith.addf %317, %318 : vector<2x128xf32>
    %320 = arith.negf %319 : vector<2x128xf32>
    %321 = math.exp %320 : vector<2x128xf32>
    %cst_85 = arith.constant 1.000000e+00 : f32
    %322 = vector.broadcast %cst_85 : f32 to vector<2x128xf32>
    %323 = arith.addf %322, %321 : vector<2x128xf32>
    %324 = arith.divf %322, %323 : vector<2x128xf32>
    %325 = vector.extract_strided_slice %324 {offsets = [0, 0], sizes = [2, 32], strides = [1, 1]} : vector<2x128xf32> to vector<2x32xf32>
    %326 = vector.extract_strided_slice %324 {offsets = [0, 32], sizes = [2, 32], strides = [1, 1]} : vector<2x128xf32> to vector<2x32xf32>
    %327 = vector.extract_strided_slice %324 {offsets = [0, 64], sizes = [2, 32], strides = [1, 1]} : vector<2x128xf32> to vector<2x32xf32>
    %cst_86 = arith.constant 2.000000e+00 : f32
    %328 = vector.broadcast %cst_86 : f32 to vector<2x32xf32>
    %329 = arith.mulf %328, %327 : vector<2x32xf32>
    %cst_87 = arith.constant 1.000000e+00 : f32
    %330 = vector.broadcast %cst_87 : f32 to vector<2x32xf32>
    %331 = arith.subf %329, %330 : vector<2x32xf32>
    %332 = vector.extract_strided_slice %324 {offsets = [0, 96], sizes = [2, 32], strides = [1, 1]} : vector<2x128xf32> to vector<2x32xf32>
    %333 = arith.mulf %326, %314 : vector<2x32xf32>
    %334 = arith.mulf %325, %331 : vector<2x32xf32>
    %335 = arith.addf %333, %334 : vector<2x32xf32>
    %336 = math.tanh %335 : vector<2x32xf32>
    %337 = arith.mulf %332, %336 : vector<2x32xf32>
    %cst_88 = arith.constant dense<0.000000e+00> : vector<2x128xf32>
    %338 = tpu.matmul %337, %209, %cst_88 {dimension_numbers = #tpu.dot_dimension_numbers<[1], [0], [0], [1], [0, 0, 1, 1], [], []>} : vector<2x32xf32>, vector<32x128xf32>, vector<2x128xf32> -> vector<2x128xf32>
    %339 = vector.extract_strided_slice %207 {offsets = [12, 0], sizes = [2, 128], strides = [1, 1]} : vector<16x128xf32> to vector<2x128xf32>
    %340 = arith.addf %338, %339 : vector<2x128xf32>
    %341 = arith.negf %340 : vector<2x128xf32>
    %342 = math.exp %341 : vector<2x128xf32>
    %cst_89 = arith.constant 1.000000e+00 : f32
    %343 = vector.broadcast %cst_89 : f32 to vector<2x128xf32>
    %344 = arith.addf %343, %342 : vector<2x128xf32>
    %345 = arith.divf %343, %344 : vector<2x128xf32>
    %346 = vector.extract_strided_slice %345 {offsets = [0, 0], sizes = [2, 32], strides = [1, 1]} : vector<2x128xf32> to vector<2x32xf32>
    %347 = vector.extract_strided_slice %345 {offsets = [0, 32], sizes = [2, 32], strides = [1, 1]} : vector<2x128xf32> to vector<2x32xf32>
    %348 = vector.extract_strided_slice %345 {offsets = [0, 64], sizes = [2, 32], strides = [1, 1]} : vector<2x128xf32> to vector<2x32xf32>
    %cst_90 = arith.constant 2.000000e+00 : f32
    %349 = vector.broadcast %cst_90 : f32 to vector<2x32xf32>
    %350 = arith.mulf %349, %348 : vector<2x32xf32>
    %cst_91 = arith.constant 1.000000e+00 : f32
    %351 = vector.broadcast %cst_91 : f32 to vector<2x32xf32>
    %352 = arith.subf %350, %351 : vector<2x32xf32>
    %353 = vector.extract_strided_slice %345 {offsets = [0, 96], sizes = [2, 32], strides = [1, 1]} : vector<2x128xf32> to vector<2x32xf32>
    %354 = arith.mulf %347, %335 : vector<2x32xf32>
    %355 = arith.mulf %346, %352 : vector<2x32xf32>
    %356 = arith.addf %354, %355 : vector<2x32xf32>
    %357 = math.tanh %356 : vector<2x32xf32>
    %358 = arith.mulf %353, %357 : vector<2x32xf32>
    %cst_92 = arith.constant dense<0.000000e+00> : vector<2x128xf32>
    %359 = tpu.matmul %358, %209, %cst_92 {dimension_numbers = #tpu.dot_dimension_numbers<[1], [0], [0], [1], [0, 0, 1, 1], [], []>} : vector<2x32xf32>, vector<32x128xf32>, vector<2x128xf32> -> vector<2x128xf32>
    %360 = vector.extract_strided_slice %207 {offsets = [14, 0], sizes = [2, 128], strides = [1, 1]} : vector<16x128xf32> to vector<2x128xf32>
    %361 = arith.addf %359, %360 : vector<2x128xf32>
    %362 = arith.negf %361 : vector<2x128xf32>
    %363 = math.exp %362 : vector<2x128xf32>
    %cst_93 = arith.constant 1.000000e+00 : f32
    %364 = vector.broadcast %cst_93 : f32 to vector<2x128xf32>
    %365 = arith.addf %364, %363 : vector<2x128xf32>
    %366 = arith.divf %364, %365 : vector<2x128xf32>
    %367 = vector.extract_strided_slice %366 {offsets = [0, 0], sizes = [2, 32], strides = [1, 1]} : vector<2x128xf32> to vector<2x32xf32>
    %368 = vector.extract_strided_slice %366 {offsets = [0, 32], sizes = [2, 32], strides = [1, 1]} : vector<2x128xf32> to vector<2x32xf32>
    %369 = vector.extract_strided_slice %366 {offsets = [0, 64], sizes = [2, 32], strides = [1, 1]} : vector<2x128xf32> to vector<2x32xf32>
    %cst_94 = arith.constant 2.000000e+00 : f32
    %370 = vector.broadcast %cst_94 : f32 to vector<2x32xf32>
    %371 = arith.mulf %370, %369 : vector<2x32xf32>
    %cst_95 = arith.constant 1.000000e+00 : f32
    %372 = vector.broadcast %cst_95 : f32 to vector<2x32xf32>
    %373 = arith.subf %371, %372 : vector<2x32xf32>
    %374 = vector.extract_strided_slice %366 {offsets = [0, 96], sizes = [2, 32], strides = [1, 1]} : vector<2x128xf32> to vector<2x32xf32>
    %375 = arith.mulf %368, %356 : vector<2x32xf32>
    %376 = arith.mulf %367, %373 : vector<2x32xf32>
    %377 = arith.addf %375, %376 : vector<2x32xf32>
    %378 = math.tanh %377 : vector<2x32xf32>
    %379 = arith.mulf %374, %378 : vector<2x32xf32>
    %c0_96 = arith.constant 0 : index
    %c0_97 = arith.constant 0 : index
    %380 = vector.load %arg6[%c0_96, %c0_97] : memref<32x4xf32, #tpu.memory_space<vmem>>, vector<32x4xf32>
    %cst_98 = arith.constant dense<0.000000e+00> : vector<2x4xf32>
    %381 = tpu.matmul %379, %380, %cst_98 {dimension_numbers = #tpu.dot_dimension_numbers<[1], [0], [0], [1], [0, 0, 1, 1], [], []>} : vector<2x32xf32>, vector<32x4xf32>, vector<2x4xf32> -> vector<2x4xf32>
    %c0_99 = arith.constant 0 : index
    %c0_100 = arith.constant 0 : index
    %382 = vector.load %arg7[%c0_99, %c0_100] : memref<1x4xf32, #tpu.memory_space<vmem>>, vector<1x4xf32>
    %383 = vector.broadcast %382 : vector<1x4xf32> to vector<2x4xf32>
    %384 = arith.addf %381, %383 : vector<2x4xf32>
    %c0_101 = arith.constant 0 : index
    %c0_102 = arith.constant 0 : index
    %385 = vector.load %arg8[%c0_101, %c0_102] : memref<2x4xf32, #tpu.memory_space<vmem>>, vector<2x4xf32>
    tpu.vector_store %arg8[%c0_101, %c0_102], %384 {strides = array<i32>} : memref<2x4xf32, #tpu.memory_space<vmem>>, vector<2x4xf32>,
    return
  }
  func.func @transform_0(%arg0: i32) -> (i32, i32) {
    %c0_i32 = arith.constant 0 : i32
    %c0_i32_0 = arith.constant 0 : i32
    return %arg0, %c0_i32 : i32, i32
  }
  func.func @transform_1(%arg0: i32) -> (i32, i32) {
    %c0_i32 = arith.constant 0 : i32
    %c0_i32_0 = arith.constant 0 : i32
    %c0_i32_1 = arith.constant 0 : i32
    return %c0_i32, %c0_i32_0 : i32, i32
  }
  func.func @transform_2(%arg0: i32) -> (i32, i32, i32) {
    %c0_i32 = arith.constant 0 : i32
    %c0_i32_0 = arith.constant 0 : i32
    %c0_i32_1 = arith.constant 0 : i32
    %c0_i32_2 = arith.constant 0 : i32
    return %c0_i32, %c0_i32_0, %c0_i32_1 : i32, i32, i32
  }
  func.func @transform_3(%arg0: i32) -> (i32, i32, i32) {
    %c0_i32 = arith.constant 0 : i32
    %c0_i32_0 = arith.constant 0 : i32
    %c0_i32_1 = arith.constant 0 : i32
    %c0_i32_2 = arith.constant 0 : i32
    return %c0_i32, %c0_i32_0, %c0_i32_1 : i32, i32, i32
  }
  func.func @transform_4(%arg0: i32) -> (i32, i32, i32) {
    %c0_i32 = arith.constant 0 : i32
    %c0_i32_0 = arith.constant 0 : i32
    %c0_i32_1 = arith.constant 0 : i32
    %c0_i32_2 = arith.constant 0 : i32
    return %c0_i32, %c0_i32_0, %c0_i32_1 : i32, i32, i32
  }
  func.func @transform_5(%arg0: i32) -> (i32, i32) {
    %c0_i32 = arith.constant 0 : i32
    %c0_i32_0 = arith.constant 0 : i32
    %c0_i32_1 = arith.constant 0 : i32
    return %c0_i32, %c0_i32_0 : i32, i32
  }
  func.func @transform_6(%arg0: i32) -> (i32, i32) {
    %c0_i32 = arith.constant 0 : i32
    %c0_i32_0 = arith.constant 0 : i32
    %c0_i32_1 = arith.constant 0 : i32
    return %c0_i32, %c0_i32_0 : i32, i32
  }
  func.func @transform_7(%arg0: i32) -> (i32, i32) {
    %c0_i32 = arith.constant 0 : i32
    %c0_i32_0 = arith.constant 0 : i32
    return %arg0, %c0_i32 : i32, i32
  }
}

</mosaic_0001>

<llo_original>
// kernel: tpu_custom_call.1
$region0: #{tpu_custom_call.1}
  #allocation0 [shape = 'u32[]', space=smem, size = 0x4, offset = 0x4, fixed_abs, tag = 'smem constant byte address 0x4 - core index']
  #allocation1 [shape = 'u32[144,128]{1,0:T(1,128)}', space=vmem, size = 0x12000, scoped, tag = 'internal scratch']
  #allocation2 [shape = 'f32[16,32]{1,0:T(8,128)}', space=vmem, size = 0x2000, scoped, tag = 'scratch operand']
  %s0 = inlined_call_operand.vmem [shape: f32[2,8], index: 0, kind: input, shape index: {}]
  %s1 = inlined_call_operand.vmem [shape: f32[1,128], index: 1, kind: input, shape index: {}]
  %s2 = inlined_call_operand.vmem [shape: f32[1,32,128], index: 2, kind: input, shape index: {}]
  %s3 = inlined_call_operand.hbm [shape: f32[2,32,128], index: 3, kind: input, shape index: {}]
  %s4 = inlined_call_operand.vmem [shape: f32[2,1,128], index: 4, kind: input, shape index: {}]
  %s5 = inlined_call_operand.vmem [shape: f32[32,4], index: 5, kind: input, shape index: {}]
  %s6 = inlined_call_operand.vmem [shape: f32[1,4], index: 6, kind: input, shape index: {}]
  %s7 = inlined_call_operand.hbm [shape: f32[2,4], index: 7, kind: output, shape index: {}]
  %s8 = sld [smem:[#allocation0]]
  $region42: #{tpu_custom_call.1} parent=0
    _
  %s10 = ssub.s32 1, %s8
  %s11 = scalar_select 0, %s10, %s8
  $region1: #{tpu_custom_call.1} parent=0
    #allocation3 [shape = 'u8[32768]{0}', space=vmem, size = 0x8000, scoped, tag = 'input window, operand 3, single buffered']
    #allocation4 [shape = 's32[1]{0}', space=sflag, size = 0x4, scoped, tag = 'scoped memory for tpu_custom_call.1']
    #allocation5 [shape = 's32[1]{0}', space=sflag, size = 0x4, scoped, tag = 'scoped memory for tpu_custom_call.1']
    #allocation6 [shape = 'u8[1024]{0}', space=vmem, size = 0x400, scoped, tag = 'output window, operand 0, single buffered']
    %12 = vsyncpa [#allocation4], 0
    %13 = vsyncpa [#allocation5], 0
    // Predicated region
    $region2: #{tpu_custom_call.1} parent=1 // pred_check
      _
    $region3: #{tpu_custom_call.1} parent=1 // pred_check_branch
      %15 = sbr.rel (0) target = $region5
    $region4: #{tpu_custom_call.1} parent=1 // pred_region
      _
    $region5: #{tpu_custom_call.1} parent=1 // pred_fallthru
      _
    // Predicated region
    $region6: #{tpu_custom_call.1} parent=1 // pred_check
      _
    $region7: #{tpu_custom_call.1} parent=1 // pred_check_branch
      %17 = sbr.rel (0) target = $region9
    $region8: #{tpu_custom_call.1} parent=1 // pred_region
      _
    $region9: #{tpu_custom_call.1} parent=1 // pred_fallthru
      _
    // Predicated region
    $region10: #{tpu_custom_call.1} parent=1 // pred_check
      _
    $region11: #{tpu_custom_call.1} parent=1 // pred_check_branch
      %19 = sbr.rel (0) target = $region13
    $region12: #{tpu_custom_call.1} parent=1 // pred_region
      _
    $region13: #{tpu_custom_call.1} parent=1 // pred_fallthru
      _
    // Predicated region
    $region14: #{tpu_custom_call.1} parent=1 // pred_check
      _
    $region15: #{tpu_custom_call.1} parent=1 // pred_check_branch
      %21 = sbr.rel (0) target = $region17
    $region16: #{tpu_custom_call.1} parent=1 // pred_region
      %s23 = ssub.s32 1024, 1024
      %24 = vsyncadd [#allocation4], %s23
      %s25 = sshll.u32 [#allocation3], 4
      %s26 = int_to_ptr.vmem [resolvable:$true] %s25
      %31 = dma.hbm_to_vmem [thread:$0]  %s3, 1024, %s26, [#allocation4], 128, 128, 8
    $region17: #{tpu_custom_call.1} parent=1 // pred_fallthru
      _
    // Predicated region
    $region18: #{tpu_custom_call.1} parent=1 // pred_check
      _
    $region19: #{tpu_custom_call.1} parent=1 // pred_check_branch
      %33 = sbr.rel (0) target = $region21
    $region20: #{tpu_custom_call.1} parent=1 // pred_region
      _
    $region21: #{tpu_custom_call.1} parent=1 // pred_fallthru
      _
    // Predicated region
    $region22: #{tpu_custom_call.1} parent=1 // pred_check
      _
    $region23: #{tpu_custom_call.1} parent=1 // pred_check_branch
      %35 = sbr.rel (0) target = $region25
    $region24: #{tpu_custom_call.1} parent=1 // pred_region
      _
    $region25: #{tpu_custom_call.1} parent=1 // pred_fallthru
      _
    // Predicated region
    $region26: #{tpu_custom_call.1} parent=1 // pred_check
      _
    $region27: #{tpu_custom_call.1} parent=1 // pred_check_branch
      %37 = sbr.rel (0) target = $region29
    $region28: #{tpu_custom_call.1} parent=1 // pred_region
      _
    $region29: #{tpu_custom_call.1} parent=1 // pred_fallthru
      _
    // Predicated region
    $region30: #{tpu_custom_call.1} parent=1 // pred_check
      _
    $region31: #{tpu_custom_call.1} parent=1 // pred_check_branch
      %39 = sbr.rel (0) target = $region33
    $region32: #{tpu_custom_call.1} parent=1 // pred_region
      %40 = dma.done [#allocation4], 1024
    $region33: #{tpu_custom_call.1} parent=1 // pred_fallthru
      _
    %v41 = vld [vmem:[%s1] sm:$0x1]
    %v42 = vld [vmem:[%s4] sm:$0x1]
    %v43 = vld [vmem:[%s0] sm:$0x3]
    %v44 = vlaneseq
    %v45 = vshrl.u32 %v44, 7
    %v46 = vsub.s32 0, %v45
    %v47 = vrot.slane %v43, %v46
    %49 = vbcast.lane.b32.xlu0 %v47, 256
    %v50 = vpop.permute.xlu0 %49
    %v51 = vlaneseq
    %v52 = vshrl.u32 %v51, 7
    %v53 = vsub.s32 1, %v52
    %v54 = vrot.slane %v43, %v53
    %56 = vbcast.lane.b32.xlu0 %v54, 256
    %v57 = vpop.permute.xlu0 %56
    %v59 = vlaneseq
    %v60 = vshrl.u32 %v59, 7
    %v61 = vsub.s32 0, %v60
    %v62 = vrot.slane %v41, %v61
    %v64 = vmul.f32 %v50, %v62
    %v65 = vmul.f32 %v57, %v62
    %v67 = vlaneseq
    %v68 = vshrl.u32 %v67, 7
    %v69 = vsub.s32 0, %v68
    %v70 = vrot.slane %v42, %v69
    %v72 = vadd.f32 %v64, %v70
    %v73 = vadd.f32 %v65, %v70
    %v74 = vld [vmem:[#allocation3] sm:$0xff]
    %v75 = vld [vmem:[#allocation3 + $0x8] sm:$0xff]
    %v76 = vld [vmem:[#allocation3 + $0x10] sm:$0xff]
    %v77 = vld [vmem:[#allocation3 + $0x18] sm:$0xff]
    %v80 = vrot.slane %v73, 7
    %vm81 = vcmask 1041409
    %v82 = vsel %vm81, %v80, %v72
    %vm84 = vcmask 261120
    %v86 = vsel %vm84, 0.0, 0
    %88 = vmatprep.subr.mxu0 0.0
    %89 = vmatpush1.msra.mxu0 %v74
    %90 = vmatprep.subr.mxu0 0.0
    %91 = vmatpush1.msra.mxu0 %v75
    %92 = vmatprep.subr.mxu0 0.0
    %93 = vmatpush1.msra.mxu0 %v76
    %94 = vmatprep.subr.mxu0 0.0
    %95 = vmatpush1.msra.mxu0 %v77
    %96 = vmatprep.subr.mxu0 0.0
    %97 = vmatpush1.msra.mxu0 0.0
    %98 = vmatprep.subr.mxu0 0.0
    %99 = vmatpush1.msra.mxu0 0.0
    %100 = vmatprep.subr.mxu0 0.0
    %101 = vmatpush1.msra.mxu0 0.0
    %102 = vmatprep.subr.mxu0 0.0
    %103 = vmatpush1.msra.mxu0 0.0
    %104 = vmatprep.subr.mxu0 0.0
    %105 = vmatpush1.msra.mxu0 0.0
    %106 = vmatprep.subr.mxu0 0.0
    %107 = vmatpush1.msra.mxu0 0.0
    %108 = vmatprep.subr.mxu0 0.0
    %109 = vmatpush1.msra.mxu0 0.0
    %110 = vmatprep.subr.mxu0 0.0
    %111 = vmatpush1.msra.mxu0 0.0
    %112 = vmatprep.subr.mxu0 0.0
    %113 = vmatpush1.msra.mxu0 0.0
    %114 = vmatprep.subr.mxu0 0.0
    %115 = vmatpush1.msra.mxu0 0.0
    %116 = vmatprep.subr.mxu0 0.0
    %117 = vmatpush1.msra.mxu0 0.0
    %118 = vmatprep.subr.mxu0 0.0
    %119 = vmatpush1.msra.mxu0 0.0
    %120 = vmatprep.subr.mxu0 0.0
    %121 = vmatpush1.msra.mxu0 0.0
    %122 = vmatprep.subr.mxu0 0.0
    %123 = vmatpush1.msra.mxu0 0.0
    %124 = vmatprep.subr.mxu0 0.0
    %125 = vmatpush1.msra.mxu0 0.0
    %126 = vmatprep.subr.mxu0 0.0
    %127 = vmatpush1.msra.mxu0 0.0
    %128 = vmatprep.subr.mxu0 0.0
    %129 = vmatpush1.msra.mxu0 0.0
    %130 = vmatprep.subr.mxu0 0.0
    %131 = vmatpush1.msra.mxu0 0.0
    %132 = vmatprep.subr.mxu0 0.0
    %133 = vmatpush1.msra.mxu0 0.0
    %134 = vmatprep.subr.mxu0 0.0
    %135 = vmatpush1.msra.mxu0 0.0
    %136 = vmatprep.subr.mxu0 0.0
    %137 = vmatpush1.msra.mxu0 0.0
    %138 = vmatprep.subr.mxu0 0.0
    %139 = vmatpush1.msra.mxu0 0.0
    %140 = vmatprep.subr.mxu0 0.0
    %141 = vmatpush1.msra.mxu0 0.0
    %142 = vmatprep.subr.mxu0 0.0
    %143 = vmatpush1.msra.mxu0 0.0
    %144 = vmatprep.subr.mxu0 0.0
    %145 = vmatpush1.msra.mxu0 0.0
    %146 = vmatprep.subr.mxu0 0.0
    %147 = vmatpush1.msra.mxu0 0.0
    %148 = vmatprep.subr.mxu0 0.0
    %149 = vmatpush1.msra.mxu0 0.0
    %150 = vmatprep.subr.mxu0 0.0
    %151 = vmatpush1.msra.mxu0 0.0
    %152 = vmatprep.mubr.f32.mxu0 0.0
    %153 = vmatmul.mubr.f32.gmra.mrb[0].mxu0 %v86
    %v154 = vpop.f32.mrb[0].mxu0
    %v155 = vadd.f32 %v82, %v154
    %v156 = vpop.f32.mrb[0].mxu0
    %157 = vdwg.mxu0
    %v158 = vxor.u32 %v155, 2147483648
    %v159 = vmul.f32 %v158, 1.442695
    %v160 = vpow.pop %v159
    %v161 = vadd.f32 %v160, 1.0
    %v162 = vrcp.pop %v161
    %v163 = vmul.f32 1.0, %v162
    %v164 = vmul.f32 %v163, 2.0
    %v165 = vsub.f32 %v164, 1.0
    %v166 = vmul.f32 %v163, 0.0
    %168 = vrot.lane.b32.xlu0 %v165, 64
    %v169 = vpop.permute.xlu0 %168
    %v171 = vmul.f32 %v163, %v169
    %173 = vrot.lane.b32.xlu0 %v171, 32
    %v174 = vpop.permute.xlu0 %173
    %v176 = vadd.f32 %v166, %v174
    %v177 = vtanh.pop %v176
    %179 = vrot.lane.b32.xlu0 %v177, 64
    %v180 = vpop.permute.xlu0 %179
    %v182 = vmul.f32 %v163, %v180
    %184 = vrot.lane.b32.xlu0 %v182, 32
    %v185 = vpop.permute.xlu0 %184
    %vm187 = vcmask 254976
    %188 = vst.msk [vmem:[#allocation2] sm:$0x3] %vm187, %v185
    %v189 = vrot.slane %v72, 1
    %v190 = vsel %vm81, %v73, %v189
    %v192 = vsel %vm84, %v185, 0
    %194 = vmatprep.subr.mxu0 0.0
    %195 = vmatpush1.msra.mxu0 %v74
    %196 = vmatprep.subr.mxu0 0.0
    %197 = vmatpush1.msra.mxu0 %v75
    %198 = vmatprep.subr.mxu0 0.0
    %199 = vmatpush1.msra.mxu0 %v76
    %200 = vmatprep.subr.mxu0 0.0
    %201 = vmatpush1.msra.mxu0 %v77
    %202 = vmatprep.subr.mxu0 0.0
    %203 = vmatpush1.msra.mxu0 0.0
    %204 = vmatprep.subr.mxu0 0.0
    %205 = vmatpush1.msra.mxu0 0.0
    %206 = vmatprep.subr.mxu0 0.0
    %207 = vmatpush1.msra.mxu0 0.0
    %208 = vmatprep.subr.mxu0 0.0
    %209 = vmatpush1.msra.mxu0 0.0
    %210 = vmatprep.subr.mxu0 0.0
    %211 = vmatpush1.msra.mxu0 0.0
    %212 = vmatprep.subr.mxu0 0.0
    %213 = vmatpush1.msra.mxu0 0.0
    %214 = vmatprep.subr.mxu0 0.0
    %215 = vmatpush1.msra.mxu0 0.0
    %216 = vmatprep.subr.mxu0 0.0
    %217 = vmatpush1.msra.mxu0 0.0
    %218 = vmatprep.subr.mxu0 0.0
    %219 = vmatpush1.msra.mxu0 0.0
    %220 = vmatprep.subr.mxu0 0.0
    %221 = vmatpush1.msra.mxu0 0.0
    %222 = vmatprep.subr.mxu0 0.0
    %223 = vmatpush1.msra.mxu0 0.0
    %224 = vmatprep.subr.mxu0 0.0
    %225 = vmatpush1.msra.mxu0 0.0
    %226 = vmatprep.subr.mxu0 0.0
    %227 = vmatpush1.msra.mxu0 0.0
    %228 = vmatprep.subr.mxu0 0.0
    %229 = vmatpush1.msra.mxu0 0.0
    %230 = vmatprep.subr.mxu0 0.0
    %231 = vmatpush1.msra.mxu0 0.0
    %232 = vmatprep.subr.mxu0 0.0
    %233 = vmatpush1.msra.mxu0 0.0
    %234 = vmatprep.subr.mxu0 0.0
    %235 = vmatpush1.msra.mxu0 0.0
    %236 = vmatprep.subr.mxu0 0.0
    %237 = vmatpush1.msra.mxu0 0.0
    %238 = vmatprep.subr.mxu0 0.0
    %239 = vmatpush1.msra.mxu0 0.0
    %240 = vmatprep.subr.mxu0 0.0
    %241 = vmatpush1.msra.mxu0 0.0
    %242 = vmatprep.subr.mxu0 0.0
    %243 = vmatpush1.msra.mxu0 0.0
    %244 = vmatprep.subr.mxu0 0.0
    %245 = vmatpush1.msra.mxu0 0.0
    %246 = vmatprep.subr.mxu0 0.0
    %247 = vmatpush1.msra.mxu0 0.0
    %248 = vmatprep.subr.mxu0 0.0
    %249 = vmatpush1.msra.mxu0 0.0
    %250 = vmatprep.subr.mxu0 0.0
    %251 = vmatpush1.msra.mxu0 0.0
    %252 = vmatprep.subr.mxu0 0.0
    %253 = vmatpush1.msra.mxu0 0.0
    %254 = vmatprep.subr.mxu0 0.0
    %255 = vmatpush1.msra.mxu0 0.0
    %256 = vmatprep.subr.mxu0 0.0
    %257 = vmatpush1.msra.mxu0 0.0
    %258 = vmatprep.mubr.f32.mxu0 0.0
    %259 = vmatmul.mubr.f32.gmra.mrb[0].mxu0 %v192
    %v260 = vpop.f32.mrb[0].mxu0
    %v261 = vadd.f32 %v190, %v260
    %v262 = vpop.f32.mrb[0].mxu0
    %263 = vdwg.mxu0
    %v264 = vxor.u32 %v261, 2147483648
    %v265 = vmul.f32 %v264, 1.442695
    %v266 = vpow.pop %v265
    %v267 = vadd.f32 %v266, 1.0
    %v268 = vrcp.pop %v267
    %v269 = vmul.f32 1.0, %v268
    %v270 = vmul.f32 %v269, 2.0
    %v271 = vsub.f32 %v270, 1.0
    %v272 = vmul.f32 %v269, %v176
    %274 = vrot.lane.b32.xlu0 %v271, 64
    %v275 = vpop.permute.xlu0 %274
    %v277 = vmul.f32 %v269, %v275
    %279 = vrot.lane.b32.xlu0 %v277, 32
    %v280 = vpop.permute.xlu0 %279
    %v282 = vadd.f32 %v272, %v280
    %v283 = vtanh.pop %v282
    %285 = vrot.lane.b32.xlu0 %v283, 64
    %v286 = vpop.permute.xlu0 %285
    %v288 = vmul.f32 %v269, %v286
    %290 = vrot.lane.b32.xlu0 %v288, 32
    %v291 = vpop.permute.xlu0 %290
    %293 = vst.msk [vmem:[#allocation2 + $0x2] sm:$0x3] %vm187, %v291
    %v294 = vrot.slane %v72, 2
    %v295 = vrot.slane %v73, 1
    %v296 = vsel %vm81, %v295, %v294
    %v298 = vsel %vm84, %v291, 0
    %300 = vmatprep.subr.mxu0 0.0
    %301 = vmatpush1.msra.mxu0 %v74
    %302 = vmatprep.subr.mxu0 0.0
    %303 = vmatpush1.msra.mxu0 %v75
    %304 = vmatprep.subr.mxu0 0.0
    %305 = vmatpush1.msra.mxu0 %v76
    %306 = vmatprep.subr.mxu0 0.0
    %307 = vmatpush1.msra.mxu0 %v77
    %308 = vmatprep.subr.mxu0 0.0
    %309 = vmatpush1.msra.mxu0 0.0
    %310 = vmatprep.subr.mxu0 0.0
    %311 = vmatpush1.msra.mxu0 0.0
    %312 = vmatprep.subr.mxu0 0.0
    %313 = vmatpush1.msra.mxu0 0.0
    %314 = vmatprep.subr.mxu0 0.0
    %315 = vmatpush1.msra.mxu0 0.0
    %316 = vmatprep.subr.mxu0 0.0
    %317 = vmatpush1.msra.mxu0 0.0
    %318 = vmatprep.subr.mxu0 0.0
    %319 = vmatpush1.msra.mxu0 0.0
    %320 = vmatprep.subr.mxu0 0.0
    %321 = vmatpush1.msra.mxu0 0.0
    %322 = vmatprep.subr.mxu0 0.0
    %323 = vmatpush1.msra.mxu0 0.0
    %324 = vmatprep.subr.mxu0 0.0
    %325 = vmatpush1.msra.mxu0 0.0
    %326 = vmatprep.subr.mxu0 0.0
    %327 = vmatpush1.msra.mxu0 0.0
    %328 = vmatprep.subr.mxu0 0.0
    %329 = vmatpush1.msra.mxu0 0.0
    %330 = vmatprep.subr.mxu0 0.0
    %331 = vmatpush1.msra.mxu0 0.0
    %332 = vmatprep.subr.mxu0 0.0
    %333 = vmatpush1.msra.mxu0 0.0
    %334 = vmatprep.subr.mxu0 0.0
    %335 = vmatpush1.msra.mxu0 0.0
    %336 = vmatprep.subr.mxu0 0.0
    %337 = vmatpush1.msra.mxu0 0.0
    %338 = vmatprep.subr.mxu0 0.0
    %339 = vmatpush1.msra.mxu0 0.0
    %340 = vmatprep.subr.mxu0 0.0
    %341 = vmatpush1.msra.mxu0 0.0
    %342 = vmatprep.subr.mxu0 0.0
    %343 = vmatpush1.msra.mxu0 0.0
    %344 = vmatprep.subr.mxu0 0.0
    %345 = vmatpush1.msra.mxu0 0.0
    %346 = vmatprep.subr.mxu0 0.0
    %347 = vmatpush1.msra.mxu0 0.0
    %348 = vmatprep.subr.mxu0 0.0
    %349 = vmatpush1.msra.mxu0 0.0
    %350 = vmatprep.subr.mxu0 0.0
    %351 = vmatpush1.msra.mxu0 0.0
    %352 = vmatprep.subr.mxu0 0.0
    %353 = vmatpush1.msra.mxu0 0.0
    %354 = vmatprep.subr.mxu0 0.0
    %355 = vmatpush1.msra.mxu0 0.0
    %356 = vmatprep.subr.mxu0 0.0
    %357 = vmatpush1.msra.mxu0 0.0
    %358 = vmatprep.subr.mxu0 0.0
    %359 = vmatpush1.msra.mxu0 0.0
    %360 = vmatprep.subr.mxu0 0.0
    %361 = vmatpush1.msra.mxu0 0.0
    %362 = vmatprep.subr.mxu0 0.0
    %363 = vmatpush1.msra.mxu0 0.0
    %364 = vmatprep.mubr.f32.mxu0 0.0
    %365 = vmatmul.mubr.f32.gmra.mrb[0].mxu0 %v298
    %v366 = vpop.f32.mrb[0].mxu0
    %v367 = vadd.f32 %v296, %v366
    %v368 = vpop.f32.mrb[0].mxu0
    %369 = vdwg.mxu0
    %v370 = vxor.u32 %v367, 2147483648
    %v371 = vmul.f32 %v370, 1.442695
    %v372 = vpow.pop %v371
    %v373 = vadd.f32 %v372, 1.0
    %v374 = vrcp.pop %v373
    %v375 = vmul.f32 1.0, %v374
    %v376 = vmul.f32 %v375, 2.0
    %v377 = vsub.f32 %v376, 1.0
    %v378 = vmul.f32 %v375, %v282
    %380 = vrot.lane.b32.xlu0 %v377, 64
    %v381 = vpop.permute.xlu0 %380
    %v383 = vmul.f32 %v375, %v381
    %385 = vrot.lane.b32.xlu0 %v383, 32
    %v386 = vpop.permute.xlu0 %385
    %v388 = vadd.f32 %v378, %v386
    %v389 = vtanh.pop %v388
    %391 = vrot.lane.b32.xlu0 %v389, 64
    %v392 = vpop.permute.xlu0 %391
    %v394 = vmul.f32 %v375, %v392
    %396 = vrot.lane.b32.xlu0 %v394, 32
    %v397 = vpop.permute.xlu0 %396
    %399 = vst.msk [vmem:[#allocation2 + $0x4] sm:$0x3] %vm187, %v397
    %v400 = vrot.slane %v72, 3
    %v401 = vrot.slane %v73, 2
    %v402 = vsel %vm81, %v401, %v400
    %v404 = vsel %vm84, %v397, 0
    %406 = vmatprep.subr.mxu0 0.0
    %407 = vmatpush1.msra.mxu0 %v74
    %408 = vmatprep.subr.mxu0 0.0
    %409 = vmatpush1.msra.mxu0 %v75
    %410 = vmatprep.subr.mxu0 0.0
    %411 = vmatpush1.msra.mxu0 %v76
    %412 = vmatprep.subr.mxu0 0.0
    %413 = vmatpush1.msra.mxu0 %v77
    %414 = vmatprep.subr.mxu0 0.0
    %415 = vmatpush1.msra.mxu0 0.0
    %416 = vmatprep.subr.mxu0 0.0
    %417 = vmatpush1.msra.mxu0 0.0
    %418 = vmatprep.subr.mxu0 0.0
    %419 = vmatpush1.msra.mxu0 0.0
    %420 = vmatprep.subr.mxu0 0.0
    %421 = vmatpush1.msra.mxu0 0.0
    %422 = vmatprep.subr.mxu0 0.0
    %423 = vmatpush1.msra.mxu0 0.0
    %424 = vmatprep.subr.mxu0 0.0
    %425 = vmatpush1.msra.mxu0 0.0
    %426 = vmatprep.subr.mxu0 0.0
    %427 = vmatpush1.msra.mxu0 0.0
    %428 = vmatprep.subr.mxu0 0.0
    %429 = vmatpush1.msra.mxu0 0.0
    %430 = vmatprep.subr.mxu0 0.0
    %431 = vmatpush1.msra.mxu0 0.0
    %432 = vmatprep.subr.mxu0 0.0
    %433 = vmatpush1.msra.mxu0 0.0
    %434 = vmatprep.subr.mxu0 0.0
    %435 = vmatpush1.msra.mxu0 0.0
    %436 = vmatprep.subr.mxu0 0.0
    %437 = vmatpush1.msra.mxu0 0.0
    %438 = vmatprep.subr.mxu0 0.0
    %439 = vmatpush1.msra.mxu0 0.0
    %440 = vmatprep.subr.mxu0 0.0
    %441 = vmatpush1.msra.mxu0 0.0
    %442 = vmatprep.subr.mxu0 0.0
    %443 = vmatpush1.msra.mxu0 0.0
    %444 = vmatprep.subr.mxu0 0.0
    %445 = vmatpush1.msra.mxu0 0.0
    %446 = vmatprep.subr.mxu0 0.0
    %447 = vmatpush1.msra.mxu0 0.0
    %448 = vmatprep.subr.mxu0 0.0
    %449 = vmatpush1.msra.mxu0 0.0
    %450 = vmatprep.subr.mxu0 0.0
    %451 = vmatpush1.msra.mxu0 0.0
    %452 = vmatprep.subr.mxu0 0.0
    %453 = vmatpush1.msra.mxu0 0.0
    %454 = vmatprep.subr.mxu0 0.0
    %455 = vmatpush1.msra.mxu0 0.0
    %456 = vmatprep.subr.mxu0 0.0
    %457 = vmatpush1.msra.mxu0 0.0
    %458 = vmatprep.subr.mxu0 0.0
    %459 = vmatpush1.msra.mxu0 0.0
    %460 = vmatprep.subr.mxu0 0.0
    %461 = vmatpush1.msra.mxu0 0.0
    %462 = vmatprep.subr.mxu0 0.0
    %463 = vmatpush1.msra.mxu0 0.0
    %464 = vmatprep.subr.mxu0 0.0
    %465 = vmatpush1.msra.mxu0 0.0
    %466 = vmatprep.subr.mxu0 0.0
    %467 = vmatpush1.msra.mxu0 0.0
    %468 = vmatprep.subr.mxu0 0.0
    %469 = vmatpush1.msra.mxu0 0.0
    %470 = vmatprep.mubr.f32.mxu0 0.0
    %471 = vmatmul.mubr.f32.gmra.mrb[0].mxu0 %v404
    %v472 = vpop.f32.mrb[0].mxu0
    %v473 = vadd.f32 %v402, %v472
    %v474 = vpop.f32.mrb[0].mxu0
    %475 = vdwg.mxu0
    %v476 = vxor.u32 %v473, 2147483648
    %v477 = vmul.f32 %v476, 1.442695
    %v478 = vpow.pop %v477
    %v479 = vadd.f32 %v478, 1.0
    %v480 = vrcp.pop %v479
    %v481 = vmul.f32 1.0, %v480
    %v482 = vmul.f32 %v481, 2.0
    %v483 = vsub.f32 %v482, 1.0
    %v484 = vmul.f32 %v481, %v388
    %486 = vrot.lane.b32.xlu0 %v483, 64
    %v487 = vpop.permute.xlu0 %486
    %v489 = vmul.f32 %v481, %v487
    %491 = vrot.lane.b32.xlu0 %v489, 32
    %v492 = vpop.permute.xlu0 %491
    %v494 = vadd.f32 %v484, %v492
    %v495 = vtanh.pop %v494
    %497 = vrot.lane.b32.xlu0 %v495, 64
    %v498 = vpop.permute.xlu0 %497
    %v500 = vmul.f32 %v481, %v498
    %502 = vrot.lane.b32.xlu0 %v500, 32
    %v503 = vpop.permute.xlu0 %502
    %505 = vst.msk [vmem:[#allocation2 + $0x6] sm:$0x3] %vm187, %v503
    %v506 = vrot.slane %v72, 4
    %v507 = vrot.slane %v73, 3
    %v508 = vsel %vm81, %v507, %v506
    %v510 = vsel %vm84, %v503, 0
    %512 = vmatprep.subr.mxu0 0.0
    %513 = vmatpush1.msra.mxu0 %v74
    %514 = vmatprep.subr.mxu0 0.0
    %515 = vmatpush1.msra.mxu0 %v75
    %516 = vmatprep.subr.mxu0 0.0
    %517 = vmatpush1.msra.mxu0 %v76
    %518 = vmatprep.subr.mxu0 0.0
    %519 = vmatpush1.msra.mxu0 %v77
    %520 = vmatprep.subr.mxu0 0.0
    %521 = vmatpush1.msra.mxu0 0.0
    %522 = vmatprep.subr.mxu0 0.0
    %523 = vmatpush1.msra.mxu0 0.0
    %524 = vmatprep.subr.mxu0 0.0
    %525 = vmatpush1.msra.mxu0 0.0
    %526 = vmatprep.subr.mxu0 0.0
    %527 = vmatpush1.msra.mxu0 0.0
    %528 = vmatprep.subr.mxu0 0.0
    %529 = vmatpush1.msra.mxu0 0.0
    %530 = vmatprep.subr.mxu0 0.0
    %531 = vmatpush1.msra.mxu0 0.0
    %532 = vmatprep.subr.mxu0 0.0
    %533 = vmatpush1.msra.mxu0 0.0
    %534 = vmatprep.subr.mxu0 0.0
    %535 = vmatpush1.msra.mxu0 0.0
    %536 = vmatprep.subr.mxu0 0.0
    %537 = vmatpush1.msra.mxu0 0.0
    %538 = vmatprep.subr.mxu0 0.0
    %539 = vmatpush1.msra.mxu0 0.0
    %540 = vmatprep.subr.mxu0 0.0
    %541 = vmatpush1.msra.mxu0 0.0
    %542 = vmatprep.subr.mxu0 0.0
    %543 = vmatpush1.msra.mxu0 0.0
    %544 = vmatprep.subr.mxu0 0.0
    %545 = vmatpush1.msra.mxu0 0.0
    %546 = vmatprep.subr.mxu0 0.0
    %547 = vmatpush1.msra.mxu0 0.0
    %548 = vmatprep.subr.mxu0 0.0
    %549 = vmatpush1.msra.mxu0 0.0
    %550 = vmatprep.subr.mxu0 0.0
    %551 = vmatpush1.msra.mxu0 0.0
    %552 = vmatprep.subr.mxu0 0.0
    %553 = vmatpush1.msra.mxu0 0.0
    %554 = vmatprep.subr.mxu0 0.0
    %555 = vmatpush1.msra.mxu0 0.0
    %556 = vmatprep.subr.mxu0 0.0
    %557 = vmatpush1.msra.mxu0 0.0
    %558 = vmatprep.subr.mxu0 0.0
    %559 = vmatpush1.msra.mxu0 0.0
    %560 = vmatprep.subr.mxu0 0.0
    %561 = vmatpush1.msra.mxu0 0.0
    %562 = vmatprep.subr.mxu0 0.0
    %563 = vmatpush1.msra.mxu0 0.0
    %564 = vmatprep.subr.mxu0 0.0
    %565 = vmatpush1.msra.mxu0 0.0
    %566 = vmatprep.subr.mxu0 0.0
    %567 = vmatpush1.msra.mxu0 0.0
    %568 = vmatprep.subr.mxu0 0.0
    %569 = vmatpush1.msra.mxu0 0.0
    %570 = vmatprep.subr.mxu0 0.0
    %571 = vmatpush1.msra.mxu0 0.0
    %572 = vmatprep.subr.mxu0 0.0
    %573 = vmatpush1.msra.mxu0 0.0
    %574 = vmatprep.subr.mxu0 0.0
    %575 = vmatpush1.msra.mxu0 0.0
    %576 = vmatprep.mubr.f32.mxu0 0.0
    %577 = vmatmul.mubr.f32.gmra.mrb[0].mxu0 %v510
    %v578 = vpop.f32.mrb[0].mxu0
    %v579 = vadd.f32 %v508, %v578
    %v580 = vpop.f32.mrb[0].mxu0
    %581 = vdwg.mxu0
    %v582 = vxor.u32 %v579, 2147483648
    %v583 = vmul.f32 %v582, 1.442695
    %v584 = vpow.pop %v583
    %v585 = vadd.f32 %v584, 1.0
    %v586 = vrcp.pop %v585
    %v587 = vmul.f32 1.0, %v586
    %v588 = vmul.f32 %v587, 2.0
    %v589 = vsub.f32 %v588, 1.0
    %v590 = vmul.f32 %v587, %v494
    %592 = vrot.lane.b32.xlu0 %v589, 64
    %v593 = vpop.permute.xlu0 %592
    %v595 = vmul.f32 %v587, %v593
    %597 = vrot.lane.b32.xlu0 %v595, 32
    %v598 = vpop.permute.xlu0 %597
    %v600 = vadd.f32 %v590, %v598
    %v601 = vtanh.pop %v600
    %603 = vrot.lane.b32.xlu0 %v601, 64
    %v604 = vpop.permute.xlu0 %603
    %v606 = vmul.f32 %v587, %v604
    %608 = vrot.lane.b32.xlu0 %v606, 32
    %v609 = vpop.permute.xlu0 %608
    %611 = vst.msk [vmem:[#allocation2 + $0x8] sm:$0x3] %vm187, %v609
    %v612 = vrot.slane %v72, 5
    %v613 = vrot.slane %v73, 4
    %v614 = vsel %vm81, %v613, %v612
    %v616 = vsel %vm84, %v609, 0
    %618 = vmatprep.subr.mxu0 0.0
    %619 = vmatpush1.msra.mxu0 %v74
    %620 = vmatprep.subr.mxu0 0.0
    %621 = vmatpush1.msra.mxu0 %v75
    %622 = vmatprep.subr.mxu0 0.0
    %623 = vmatpush1.msra.mxu0 %v76
    %624 = vmatprep.subr.mxu0 0.0
    %625 = vmatpush1.msra.mxu0 %v77
    %626 = vmatprep.subr.mxu0 0.0
    %627 = vmatpush1.msra.mxu0 0.0
    %628 = vmatprep.subr.mxu0 0.0
    %629 = vmatpush1.msra.mxu0 0.0
    %630 = vmatprep.subr.mxu0 0.0
    %631 = vmatpush1.msra.mxu0 0.0
    %632 = vmatprep.subr.mxu0 0.0
    %633 = vmatpush1.msra.mxu0 0.0
    %634 = vmatprep.subr.mxu0 0.0
    %635 = vmatpush1.msra.mxu0 0.0
    %636 = vmatprep.subr.mxu0 0.0
    %637 = vmatpush1.msra.mxu0 0.0
    %638 = vmatprep.subr.mxu0 0.0
    %639 = vmatpush1.msra.mxu0 0.0
    %640 = vmatprep.subr.mxu0 0.0
    %641 = vmatpush1.msra.mxu0 0.0
    %642 = vmatprep.subr.mxu0 0.0
    %643 = vmatpush1.msra.mxu0 0.0
    %644 = vmatprep.subr.mxu0 0.0
    %645 = vmatpush1.msra.mxu0 0.0
    %646 = vmatprep.subr.mxu0 0.0
    %647 = vmatpush1.msra.mxu0 0.0
    %648 = vmatprep.subr.mxu0 0.0
    %649 = vmatpush1.msra.mxu0 0.0
    %650 = vmatprep.subr.mxu0 0.0
    %651 = vmatpush1.msra.mxu0 0.0
    %652 = vmatprep.subr.mxu0 0.0
    %653 = vmatpush1.msra.mxu0 0.0
    %654 = vmatprep.subr.mxu0 0.0
    %655 = vmatpush1.msra.mxu0 0.0
    %656 = vmatprep.subr.mxu0 0.0
    %657 = vmatpush1.msra.mxu0 0.0
    %658 = vmatprep.subr.mxu0 0.0
    %659 = vmatpush1.msra.mxu0 0.0
    %660 = vmatprep.subr.mxu0 0.0
    %661 = vmatpush1.msra.mxu0 0.0
    %662 = vmatprep.subr.mxu0 0.0
    %663 = vmatpush1.msra.mxu0 0.0
    %664 = vmatprep.subr.mxu0 0.0
    %665 = vmatpush1.msra.mxu0 0.0
    %666 = vmatprep.subr.mxu0 0.0
    %667 = vmatpush1.msra.mxu0 0.0
    %668 = vmatprep.subr.mxu0 0.0
    %669 = vmatpush1.msra.mxu0 0.0
    %670 = vmatprep.subr.mxu0 0.0
    %671 = vmatpush1.msra.mxu0 0.0
    %672 = vmatprep.subr.mxu0 0.0
    %673 = vmatpush1.msra.mxu0 0.0
    %674 = vmatprep.subr.mxu0 0.0
    %675 = vmatpush1.msra.mxu0 0.0
    %676 = vmatprep.subr.mxu0 0.0
    %677 = vmatpush1.msra.mxu0 0.0
    %678 = vmatprep.subr.mxu0 0.0
    %679 = vmatpush1.msra.mxu0 0.0
    %680 = vmatprep.subr.mxu0 0.0
    %681 = vmatpush1.msra.mxu0 0.0
    %682 = vmatprep.mubr.f32.mxu0 0.0
    %683 = vmatmul.mubr.f32.gmra.mrb[0].mxu0 %v616
    %v684 = vpop.f32.mrb[0].mxu0
    %v685 = vadd.f32 %v614, %v684
    %v686 = vpop.f32.mrb[0].mxu0
    %687 = vdwg.mxu0
    %v688 = vxor.u32 %v685, 2147483648
    %v689 = vmul.f32 %v688, 1.442695
    %v690 = vpow.pop %v689
    %v691 = vadd.f32 %v690, 1.0
    %v692 = vrcp.pop %v691
    %v693 = vmul.f32 1.0, %v692
    %v694 = vmul.f32 %v693, 2.0
    %v695 = vsub.f32 %v694, 1.0
    %v696 = vmul.f32 %v693, %v600
    %698 = vrot.lane.b32.xlu0 %v695, 64
    %v699 = vpop.permute.xlu0 %698
    %v701 = vmul.f32 %v693, %v699
    %703 = vrot.lane.b32.xlu0 %v701, 32
    %v704 = vpop.permute.xlu0 %703
    %v706 = vadd.f32 %v696, %v704
    %v707 = vtanh.pop %v706
    %709 = vrot.lane.b32.xlu0 %v707, 64
    %v710 = vpop.permute.xlu0 %709
    %v712 = vmul.f32 %v693, %v710
    %714 = vrot.lane.b32.xlu0 %v712, 32
    %v715 = vpop.permute.xlu0 %714
    %717 = vst.msk [vmem:[#allocation2 + $0xa] sm:$0x3] %vm187, %v715
    %v718 = vrot.slane %v72, 6
    %v719 = vrot.slane %v73, 5
    %v720 = vsel %vm81, %v719, %v718
    %v722 = vsel %vm84, %v715, 0
    %724 = vmatprep.subr.mxu0 0.0
    %725 = vmatpush1.msra.mxu0 %v74
    %726 = vmatprep.subr.mxu0 0.0
    %727 = vmatpush1.msra.mxu0 %v75
    %728 = vmatprep.subr.mxu0 0.0
    %729 = vmatpush1.msra.mxu0 %v76
    %730 = vmatprep.subr.mxu0 0.0
    %731 = vmatpush1.msra.mxu0 %v77
    %732 = vmatprep.subr.mxu0 0.0
    %733 = vmatpush1.msra.mxu0 0.0
    %734 = vmatprep.subr.mxu0 0.0
    %735 = vmatpush1.msra.mxu0 0.0
    %736 = vmatprep.subr.mxu0 0.0
    %737 = vmatpush1.msra.mxu0 0.0
    %738 = vmatprep.subr.mxu0 0.0
    %739 = vmatpush1.msra.mxu0 0.0
    %740 = vmatprep.subr.mxu0 0.0
    %741 = vmatpush1.msra.mxu0 0.0
    %742 = vmatprep.subr.mxu0 0.0
    %743 = vmatpush1.msra.mxu0 0.0
    %744 = vmatprep.subr.mxu0 0.0
    %745 = vmatpush1.msra.mxu0 0.0
    %746 = vmatprep.subr.mxu0 0.0
    %747 = vmatpush1.msra.mxu0 0.0
    %748 = vmatprep.subr.mxu0 0.0
    %749 = vmatpush1.msra.mxu0 0.0
    %750 = vmatprep.subr.mxu0 0.0
    %751 = vmatpush1.msra.mxu0 0.0
    %752 = vmatprep.subr.mxu0 0.0
    %753 = vmatpush1.msra.mxu0 0.0
    %754 = vmatprep.subr.mxu0 0.0
    %755 = vmatpush1.msra.mxu0 0.0
    %756 = vmatprep.subr.mxu0 0.0
    %757 = vmatpush1.msra.mxu0 0.0
    %758 = vmatprep.subr.mxu0 0.0
    %759 = vmatpush1.msra.mxu0 0.0
    %760 = vmatprep.subr.mxu0 0.0
    %761 = vmatpush1.msra.mxu0 0.0
    %762 = vmatprep.subr.mxu0 0.0
    %763 = vmatpush1.msra.mxu0 0.0
    %764 = vmatprep.subr.mxu0 0.0
    %765 = vmatpush1.msra.mxu0 0.0
    %766 = vmatprep.subr.mxu0 0.0
    %767 = vmatpush1.msra.mxu0 0.0
    %768 = vmatprep.subr.mxu0 0.0
    %769 = vmatpush1.msra.mxu0 0.0
    %770 = vmatprep.subr.mxu0 0.0
    %771 = vmatpush1.msra.mxu0 0.0
    %772 = vmatprep.subr.mxu0 0.0
    %773 = vmatpush1.msra.mxu0 0.0
    %774 = vmatprep.subr.mxu0 0.0
    %775 = vmatpush1.msra.mxu0 0.0
    %776 = vmatprep.subr.mxu0 0.0
    %777 = vmatpush1.msra.mxu0 0.0
    %778 = vmatprep.subr.mxu0 0.0
    %779 = vmatpush1.msra.mxu0 0.0
    %780 = vmatprep.subr.mxu0 0.0
    %781 = vmatpush1.msra.mxu0 0.0
    %782 = vmatprep.subr.mxu0 0.0
    %783 = vmatpush1.msra.mxu0 0.0
    %784 = vmatprep.subr.mxu0 0.0
    %785 = vmatpush1.msra.mxu0 0.0
    %786 = vmatprep.subr.mxu0 0.0
    %787 = vmatpush1.msra.mxu0 0.0
    %788 = vmatprep.mubr.f32.mxu0 0.0
    %789 = vmatmul.mubr.f32.gmra.mrb[0].mxu0 %v722
    %v790 = vpop.f32.mrb[0].mxu0
    %v791 = vadd.f32 %v720, %v790
    %v792 = vpop.f32.mrb[0].mxu0
    %793 = vdwg.mxu0
    %v794 = vxor.u32 %v791, 2147483648
    %v795 = vmul.f32 %v794, 1.442695
    %v796 = vpow.pop %v795
    %v797 = vadd.f32 %v796, 1.0
    %v798 = vrcp.pop %v797
    %v799 = vmul.f32 1.0, %v798
    %v800 = vmul.f32 %v799, 2.0
    %v801 = vsub.f32 %v800, 1.0
    %v802 = vmul.f32 %v799, %v706
    %804 = vrot.lane.b32.xlu0 %v801, 64
    %v805 = vpop.permute.xlu0 %804
    %v807 = vmul.f32 %v799, %v805
    %809 = vrot.lane.b32.xlu0 %v807, 32
    %v810 = vpop.permute.xlu0 %809
    %v812 = vadd.f32 %v802, %v810
    %v813 = vtanh.pop %v812
    %815 = vrot.lane.b32.xlu0 %v813, 64
    %v816 = vpop.permute.xlu0 %815
    %v818 = vmul.f32 %v799, %v816
    %820 = vrot.lane.b32.xlu0 %v818, 32
    %v821 = vpop.permute.xlu0 %820
    %823 = vst.msk [vmem:[#allocation2 + $0xc] sm:$0x3] %vm187, %v821
    %v824 = vrot.slane %v72, 7
    %v825 = vrot.slane %v73, 6
    %v826 = vsel %vm81, %v825, %v824
    %v828 = vsel %vm84, %v821, 0
    %830 = vmatprep.subr.mxu0 0.0
    %831 = vmatpush1.msra.mxu0 %v74
    %832 = vmatprep.subr.mxu0 0.0
    %833 = vmatpush1.msra.mxu0 %v75
    %834 = vmatprep.subr.mxu0 0.0
    %835 = vmatpush1.msra.mxu0 %v76
    %836 = vmatprep.subr.mxu0 0.0
    %837 = vmatpush1.msra.mxu0 %v77
    %838 = vmatprep.subr.mxu0 0.0
    %839 = vmatpush1.msra.mxu0 0.0
    %840 = vmatprep.subr.mxu0 0.0
    %841 = vmatpush1.msra.mxu0 0.0
    %842 = vmatprep.subr.mxu0 0.0
    %843 = vmatpush1.msra.mxu0 0.0
    %844 = vmatprep.subr.mxu0 0.0
    %845 = vmatpush1.msra.mxu0 0.0
    %846 = vmatprep.subr.mxu0 0.0
    %847 = vmatpush1.msra.mxu0 0.0
    %848 = vmatprep.subr.mxu0 0.0
    %849 = vmatpush1.msra.mxu0 0.0
    %850 = vmatprep.subr.mxu0 0.0
    %851 = vmatpush1.msra.mxu0 0.0
    %852 = vmatprep.subr.mxu0 0.0
    %853 = vmatpush1.msra.mxu0 0.0
    %854 = vmatprep.subr.mxu0 0.0
    %855 = vmatpush1.msra.mxu0 0.0
    %856 = vmatprep.subr.mxu0 0.0
    %857 = vmatpush1.msra.mxu0 0.0
    %858 = vmatprep.subr.mxu0 0.0
    %859 = vmatpush1.msra.mxu0 0.0
    %860 = vmatprep.subr.mxu0 0.0
    %861 = vmatpush1.msra.mxu0 0.0
    %862 = vmatprep.subr.mxu0 0.0
    %863 = vmatpush1.msra.mxu0 0.0
    %864 = vmatprep.subr.mxu0 0.0
    %865 = vmatpush1.msra.mxu0 0.0
    %866 = vmatprep.subr.mxu0 0.0
    %867 = vmatpush1.msra.mxu0 0.0
    %868 = vmatprep.subr.mxu0 0.0
    %869 = vmatpush1.msra.mxu0 0.0
    %870 = vmatprep.subr.mxu0 0.0
    %871 = vmatpush1.msra.mxu0 0.0
    %872 = vmatprep.subr.mxu0 0.0
    %873 = vmatpush1.msra.mxu0 0.0
    %874 = vmatprep.subr.mxu0 0.0
    %875 = vmatpush1.msra.mxu0 0.0
    %876 = vmatprep.subr.mxu0 0.0
    %877 = vmatpush1.msra.mxu0 0.0
    %878 = vmatprep.subr.mxu0 0.0
    %879 = vmatpush1.msra.mxu0 0.0
    %880 = vmatprep.subr.mxu0 0.0
    %881 = vmatpush1.msra.mxu0 0.0
    %882 = vmatprep.subr.mxu0 0.0
    %883 = vmatpush1.msra.mxu0 0.0
    %884 = vmatprep.subr.mxu0 0.0
    %885 = vmatpush1.msra.mxu0 0.0
    %886 = vmatprep.subr.mxu0 0.0
    %887 = vmatpush1.msra.mxu0 0.0
    %888 = vmatprep.subr.mxu0 0.0
    %889 = vmatpush1.msra.mxu0 0.0
    %890 = vmatprep.subr.mxu0 0.0
    %891 = vmatpush1.msra.mxu0 0.0
    %892 = vmatprep.subr.mxu0 0.0
    %893 = vmatpush1.msra.mxu0 0.0
    %894 = vmatprep.mubr.f32.mxu0 0.0
    %895 = vmatmul.mubr.f32.gmra.mrb[0].mxu0 %v828
    %v896 = vpop.f32.mrb[0].mxu0
    %v897 = vadd.f32 %v826, %v896
    %v898 = vpop.f32.mrb[0].mxu0
    %899 = vdwg.mxu0
    %v900 = vxor.u32 %v897, 2147483648
    %v901 = vmul.f32 %v900, 1.442695
    %v902 = vpow.pop %v901
    %v903 = vadd.f32 %v902, 1.0
    %v904 = vrcp.pop %v903
    %v905 = vmul.f32 1.0, %v904
    %v906 = vmul.f32 %v905, 2.0
    %v907 = vsub.f32 %v906, 1.0
    %v908 = vmul.f32 %v905, %v812
    %910 = vrot.lane.b32.xlu0 %v907, 64
    %v911 = vpop.permute.xlu0 %910
    %v913 = vmul.f32 %v905, %v911
    %915 = vrot.lane.b32.xlu0 %v913, 32
    %v916 = vpop.permute.xlu0 %915
    %v918 = vadd.f32 %v908, %v916
    %v919 = vtanh.pop %v918
    %921 = vrot.lane.b32.xlu0 %v919, 64
    %v922 = vpop.permute.xlu0 %921
    %v924 = vmul.f32 %v905, %v922
    %926 = vrot.lane.b32.xlu0 %v924, 32
    %v927 = vpop.permute.xlu0 %926
    %929 = vst.msk [vmem:[#allocation2 + $0xe] sm:$0x3] %vm187, %v927
    %v930 = vld [vmem:[#allocation2] sm:$0xff]
    %v931 = vld [vmem:[#allocation2 + $0x8] sm:$0xff]
    %v932 = vld [vmem:[%s2] sm:$0xff]
    %v933 = vld [vmem:[%s2 + $0x8] sm:$0xff]
    %v934 = vld [vmem:[%s2 + $0x10] sm:$0xff]
    %v935 = vld [vmem:[%s2 + $0x18] sm:$0xff]
    %s936 = scalar_lea.vmem %s4, 1
    %v937 = vld [vmem:[%s936] sm:$0x1]
    %v939 = vlaneseq
    %v940 = vshrl.u32 %v939, 7
    %v941 = vsub.s32 0, %v940
    %v942 = vrot.slane %v937, %v941
    %v945 = vsel %vm84, %v930, 0
    %v948 = vsel %vm84, %v931, 0
    %950 = vmatprep.subr.mxu0 0.0
    %951 = vmatpush1.msra.mxu0 %v932
    %952 = vmatprep.subr.mxu0 0.0
    %953 = vmatpush1.msra.mxu0 %v933
    %954 = vmatprep.subr.mxu0 0.0
    %955 = vmatpush1.msra.mxu0 %v934
    %956 = vmatprep.subr.mxu0 0.0
    %957 = vmatpush1.msra.mxu0 %v935
    %958 = vmatprep.subr.mxu0 0.0
    %959 = vmatpush1.msra.mxu0 0.0
    %960 = vmatprep.subr.mxu0 0.0
    %961 = vmatpush1.msra.mxu0 0.0
    %962 = vmatprep.subr.mxu0 0.0
    %963 = vmatpush1.msra.mxu0 0.0
    %964 = vmatprep.subr.mxu0 0.0
    %965 = vmatpush1.msra.mxu0 0.0
    %966 = vmatprep.subr.mxu0 0.0
    %967 = vmatpush1.msra.mxu0 0.0
    %968 = vmatprep.subr.mxu0 0.0
    %969 = vmatpush1.msra.mxu0 0.0
    %970 = vmatprep.subr.mxu0 0.0
    %971 = vmatpush1.msra.mxu0 0.0
    %972 = vmatprep.subr.mxu0 0.0
    %973 = vmatpush1.msra.mxu0 0.0
    %974 = vmatprep.subr.mxu0 0.0
    %975 = vmatpush1.msra.mxu0 0.0
    %976 = vmatprep.subr.mxu0 0.0
    %977 = vmatpush1.msra.mxu0 0.0
    %978 = vmatprep.subr.mxu0 0.0
    %979 = vmatpush1.msra.mxu0 0.0
    %980 = vmatprep.subr.mxu0 0.0
    %981 = vmatpush1.msra.mxu0 0.0
    %982 = vmatprep.subr.mxu0 0.0
    %983 = vmatpush1.msra.mxu0 0.0
    %984 = vmatprep.subr.mxu0 0.0
    %985 = vmatpush1.msra.mxu0 0.0
    %986 = vmatprep.subr.mxu0 0.0
    %987 = vmatpush1.msra.mxu0 0.0
    %988 = vmatprep.subr.mxu0 0.0
    %989 = vmatpush1.msra.mxu0 0.0
    %990 = vmatprep.subr.mxu0 0.0
    %991 = vmatpush1.msra.mxu0 0.0
    %992 = vmatprep.subr.mxu0 0.0
    %993 = vmatpush1.msra.mxu0 0.0
    %994 = vmatprep.subr.mxu0 0.0
    %995 = vmatpush1.msra.mxu0 0.0
    %996 = vmatprep.subr.mxu0 0.0
    %997 = vmatpush1.msra.mxu0 0.0
    %998 = vmatprep.subr.mxu0 0.0
    %999 = vmatpush1.msra.mxu0 0.0
    %1000 = vmatprep.subr.mxu0 0.0
    %1001 = vmatpush1.msra.mxu0 0.0
    %1002 = vmatprep.subr.mxu0 0.0
    %1003 = vmatpush1.msra.mxu0 0.0
    %1004 = vmatprep.subr.mxu0 0.0
    %1005 = vmatpush1.msra.mxu0 0.0
    %1006 = vmatprep.subr.mxu0 0.0
    %1007 = vmatpush1.msra.mxu0 0.0
    %1008 = vmatprep.subr.mxu0 0.0
    %1009 = vmatpush1.msra.mxu0 0.0
    %1010 = vmatprep.subr.mxu0 0.0
    %1011 = vmatpush1.msra.mxu0 0.0
    %1012 = vmatprep.subr.mxu0 0.0
    %1013 = vmatpush1.msra.mxu0 0.0
    %1014 = vmatprep.mubr.f32.mxu0 0.0
    %1015 = vmatmul.mubr.f32.gmra.mrb[0].mxu0 %v945
    %v1016 = vpop.f32.mrb[0].mxu0
    %v1017 = vadd.f32 %v942, %v1016
    %v1018 = vpop.f32.mrb[0].mxu0
    %1019 = vmatprep.mubr.f32.mxu0 0.0
    %1020 = vmatmul.mubr.f32.gmra.mrb[0].mxu0 %v948
    %v1021 = vpop.f32.mrb[0].mxu0
    %v1022 = vadd.f32 %v942, %v1021
    %v1023 = vpop.f32.mrb[0].mxu0
    %1024 = vdwg.mxu0
    %s1025 = scalar_lea.vmem [#allocation3], 32
    %v1026 = vld [vmem:[%s1025] sm:$0xff]
    %v1027 = vld [vmem:[%s1025 + $0x8] sm:$0xff]
    %v1028 = vld [vmem:[%s1025 + $0x10] sm:$0xff]
    %v1029 = vld [vmem:[%s1025 + $0x18] sm:$0xff]
    %1030 = vmatprep.subr.mxu0 0.0
    %1031 = vmatpush1.msra.mxu0 %v1026
    %1032 = vmatprep.subr.mxu0 0.0
    %1033 = vmatpush1.msra.mxu0 %v1027
    %1034 = vmatprep.subr.mxu0 0.0
    %1035 = vmatpush1.msra.mxu0 %v1028
    %1036 = vmatprep.subr.mxu0 0.0
    %1037 = vmatpush1.msra.mxu0 %v1029
    %1038 = vmatprep.subr.mxu0 0.0
    %1039 = vmatpush1.msra.mxu0 0.0
    %1040 = vmatprep.subr.mxu0 0.0
    %1041 = vmatpush1.msra.mxu0 0.0
    %1042 = vmatprep.subr.mxu0 0.0
    %1043 = vmatpush1.msra.mxu0 0.0
    %1044 = vmatprep.subr.mxu0 0.0
    %1045 = vmatpush1.msra.mxu0 0.0
    %1046 = vmatprep.subr.mxu0 0.0
    %1047 = vmatpush1.msra.mxu0 0.0
    %1048 = vmatprep.subr.mxu0 0.0
    %1049 = vmatpush1.msra.mxu0 0.0
    %1050 = vmatprep.subr.mxu0 0.0
    %1051 = vmatpush1.msra.mxu0 0.0
    %1052 = vmatprep.subr.mxu0 0.0
    %1053 = vmatpush1.msra.mxu0 0.0
    %1054 = vmatprep.subr.mxu0 0.0
    %1055 = vmatpush1.msra.mxu0 0.0
    %1056 = vmatprep.subr.mxu0 0.0
    %1057 = vmatpush1.msra.mxu0 0.0
    %1058 = vmatprep.subr.mxu0 0.0
    %1059 = vmatpush1.msra.mxu0 0.0
    %1060 = vmatprep.subr.mxu0 0.0
    %1061 = vmatpush1.msra.mxu0 0.0
    %1062 = vmatprep.subr.mxu0 0.0
    %1063 = vmatpush1.msra.mxu0 0.0
    %1064 = vmatprep.subr.mxu0 0.0
    %1065 = vmatpush1.msra.mxu0 0.0
    %1066 = vmatprep.subr.mxu0 0.0
    %1067 = vmatpush1.msra.mxu0 0.0
    %1068 = vmatprep.subr.mxu0 0.0
    %1069 = vmatpush1.msra.mxu0 0.0
    %1070 = vmatprep.subr.mxu0 0.0
    %1071 = vmatpush1.msra.mxu0 0.0
    %1072 = vmatprep.subr.mxu0 0.0
    %1073 = vmatpush1.msra.mxu0 0.0
    %1074 = vmatprep.subr.mxu0 0.0
    %1075 = vmatpush1.msra.mxu0 0.0
    %1076 = vmatprep.subr.mxu0 0.0
    %1077 = vmatpush1.msra.mxu0 0.0
    %1078 = vmatprep.subr.mxu0 0.0
    %1079 = vmatpush1.msra.mxu0 0.0
    %1080 = vmatprep.subr.mxu0 0.0
    %1081 = vmatpush1.msra.mxu0 0.0
    %1082 = vmatprep.subr.mxu0 0.0
    %1083 = vmatpush1.msra.mxu0 0.0
    %1084 = vmatprep.subr.mxu0 0.0
    %1085 = vmatpush1.msra.mxu0 0.0
    %1086 = vmatprep.subr.mxu0 0.0
    %1087 = vmatpush1.msra.mxu0 0.0
    %1088 = vmatprep.subr.mxu0 0.0
    %1089 = vmatpush1.msra.mxu0 0.0
    %1090 = vmatprep.subr.mxu0 0.0
    %1091 = vmatpush1.msra.mxu0 0.0
    %1092 = vmatprep.subr.mxu0 0.0
    %1093 = vmatpush1.msra.mxu0 0.0
    %1094 = vmatprep.mubr.f32.mxu0 0.0
    %1095 = vmatmul.mubr.f32.gmra.mrb[0].mxu0 %v86
    %v1096 = vpop.f32.mrb[0].mxu0
    %v1097 = vadd.f32 %v1017, %v1096
    %v1098 = vpop.f32.mrb[0].mxu0
    %1099 = vdwg.mxu0
    %v1100 = vxor.u32 %v1097, 2147483648
    %v1101 = vmul.f32 %v1100, 1.442695
    %v1102 = vpow.pop %v1101
    %v1103 = vadd.f32 %v1102, 1.0
    %v1104 = vrcp.pop %v1103
    %v1105 = vmul.f32 1.0, %v1104
    %v1106 = vmul.f32 %v1105, 2.0
    %v1107 = vsub.f32 %v1106, 1.0
    %v1108 = vmul.f32 %v1105, 0.0
    %1110 = vrot.lane.b32.xlu0 %v1107, 64
    %v1111 = vpop.permute.xlu0 %1110
    %v1113 = vmul.f32 %v1105, %v1111
    %1115 = vrot.lane.b32.xlu0 %v1113, 32
    %v1116 = vpop.permute.xlu0 %1115
    %v1118 = vadd.f32 %v1108, %v1116
    %v1119 = vtanh.pop %v1118
    %1121 = vrot.lane.b32.xlu0 %v1119, 64
    %v1122 = vpop.permute.xlu0 %1121
    %v1124 = vmul.f32 %v1105, %v1122
    %1126 = vrot.lane.b32.xlu0 %v1124, 32
    %v1127 = vpop.permute.xlu0 %1126
    %v1129 = vrot.slane %v1017, 2
    %v1131 = vsel %vm84, %v1127, 0
    %1133 = vmatprep.subr.mxu0 0.0
    %1134 = vmatpush1.msra.mxu0 %v1026
    %1135 = vmatprep.subr.mxu0 0.0
    %1136 = vmatpush1.msra.mxu0 %v1027
    %1137 = vmatprep.subr.mxu0 0.0
    %1138 = vmatpush1.msra.mxu0 %v1028
    %1139 = vmatprep.subr.mxu0 0.0
    %1140 = vmatpush1.msra.mxu0 %v1029
    %1141 = vmatprep.subr.mxu0 0.0
    %1142 = vmatpush1.msra.mxu0 0.0
    %1143 = vmatprep.subr.mxu0 0.0
    %1144 = vmatpush1.msra.mxu0 0.0
    %1145 = vmatprep.subr.mxu0 0.0
    %1146 = vmatpush1.msra.mxu0 0.0
    %1147 = vmatprep.subr.mxu0 0.0
    %1148 = vmatpush1.msra.mxu0 0.0
    %1149 = vmatprep.subr.mxu0 0.0
    %1150 = vmatpush1.msra.mxu0 0.0
    %1151 = vmatprep.subr.mxu0 0.0
    %1152 = vmatpush1.msra.mxu0 0.0
    %1153 = vmatprep.subr.mxu0 0.0
    %1154 = vmatpush1.msra.mxu0 0.0
    %1155 = vmatprep.subr.mxu0 0.0
    %1156 = vmatpush1.msra.mxu0 0.0
    %1157 = vmatprep.subr.mxu0 0.0
    %1158 = vmatpush1.msra.mxu0 0.0
    %1159 = vmatprep.subr.mxu0 0.0
    %1160 = vmatpush1.msra.mxu0 0.0
    %1161 = vmatprep.subr.mxu0 0.0
    %1162 = vmatpush1.msra.mxu0 0.0
    %1163 = vmatprep.subr.mxu0 0.0
    %1164 = vmatpush1.msra.mxu0 0.0
    %1165 = vmatprep.subr.mxu0 0.0
    %1166 = vmatpush1.msra.mxu0 0.0
    %1167 = vmatprep.subr.mxu0 0.0
    %1168 = vmatpush1.msra.mxu0 0.0
    %1169 = vmatprep.subr.mxu0 0.0
    %1170 = vmatpush1.msra.mxu0 0.0
    %1171 = vmatprep.subr.mxu0 0.0
    %1172 = vmatpush1.msra.mxu0 0.0
    %1173 = vmatprep.subr.mxu0 0.0
    %1174 = vmatpush1.msra.mxu0 0.0
    %1175 = vmatprep.subr.mxu0 0.0
    %1176 = vmatpush1.msra.mxu0 0.0
    %1177 = vmatprep.subr.mxu0 0.0
    %1178 = vmatpush1.msra.mxu0 0.0
    %1179 = vmatprep.subr.mxu0 0.0
    %1180 = vmatpush1.msra.mxu0 0.0
    %1181 = vmatprep.subr.mxu0 0.0
    %1182 = vmatpush1.msra.mxu0 0.0
    %1183 = vmatprep.subr.mxu0 0.0
    %1184 = vmatpush1.msra.mxu0 0.0
    %1185 = vmatprep.subr.mxu0 0.0
    %1186 = vmatpush1.msra.mxu0 0.0
    %1187 = vmatprep.subr.mxu0 0.0
    %1188 = vmatpush1.msra.mxu0 0.0
    %1189 = vmatprep.subr.mxu0 0.0
    %1190 = vmatpush1.msra.mxu0 0.0
    %1191 = vmatprep.subr.mxu0 0.0
    %1192 = vmatpush1.msra.mxu0 0.0
    %1193 = vmatprep.subr.mxu0 0.0
    %1194 = vmatpush1.msra.mxu0 0.0
    %1195 = vmatprep.subr.mxu0 0.0
    %1196 = vmatpush1.msra.mxu0 0.0
    %1197 = vmatprep.mubr.f32.mxu0 0.0
    %1198 = vmatmul.mubr.f32.gmra.mrb[0].mxu0 %v1131
    %v1199 = vpop.f32.mrb[0].mxu0
    %v1200 = vadd.f32 %v1129, %v1199
    %v1201 = vpop.f32.mrb[0].mxu0
    %1202 = vdwg.mxu0
    %v1203 = vxor.u32 %v1200, 2147483648
    %v1204 = vmul.f32 %v1203, 1.442695
    %v1205 = vpow.pop %v1204
    %v1206 = vadd.f32 %v1205, 1.0
    %v1207 = vrcp.pop %v1206
    %v1208 = vmul.f32 1.0, %v1207
    %v1209 = vmul.f32 %v1208, 2.0
    %v1210 = vsub.f32 %v1209, 1.0
    %v1211 = vmul.f32 %v1208, %v1118
    %1213 = vrot.lane.b32.xlu0 %v1210, 64
    %v1214 = vpop.permute.xlu0 %1213
    %v1216 = vmul.f32 %v1208, %v1214
    %1218 = vrot.lane.b32.xlu0 %v1216, 32
    %v1219 = vpop.permute.xlu0 %1218
    %v1221 = vadd.f32 %v1211, %v1219
    %v1222 = vtanh.pop %v1221
    %1224 = vrot.lane.b32.xlu0 %v1222, 64
    %v1225 = vpop.permute.xlu0 %1224
    %v1227 = vmul.f32 %v1208, %v1225
    %1229 = vrot.lane.b32.xlu0 %v1227, 32
    %v1230 = vpop.permute.xlu0 %1229
    %v1231 = vrot.slane %v1017, 4
    %v1233 = vsel %vm84, %v1230, 0
    %1235 = vmatprep.subr.mxu0 0.0
    %1236 = vmatpush1.msra.mxu0 %v1026
    %1237 = vmatprep.subr.mxu0 0.0
    %1238 = vmatpush1.msra.mxu0 %v1027
    %1239 = vmatprep.subr.mxu0 0.0
    %1240 = vmatpush1.msra.mxu0 %v1028
    %1241 = vmatprep.subr.mxu0 0.0
    %1242 = vmatpush1.msra.mxu0 %v1029
    %1243 = vmatprep.subr.mxu0 0.0
    %1244 = vmatpush1.msra.mxu0 0.0
    %1245 = vmatprep.subr.mxu0 0.0
    %1246 = vmatpush1.msra.mxu0 0.0
    %1247 = vmatprep.subr.mxu0 0.0
    %1248 = vmatpush1.msra.mxu0 0.0
    %1249 = vmatprep.subr.mxu0 0.0
    %1250 = vmatpush1.msra.mxu0 0.0
    %1251 = vmatprep.subr.mxu0 0.0
    %1252 = vmatpush1.msra.mxu0 0.0
    %1253 = vmatprep.subr.mxu0 0.0
    %1254 = vmatpush1.msra.mxu0 0.0
    %1255 = vmatprep.subr.mxu0 0.0
    %1256 = vmatpush1.msra.mxu0 0.0
    %1257 = vmatprep.subr.mxu0 0.0
    %1258 = vmatpush1.msra.mxu0 0.0
    %1259 = vmatprep.subr.mxu0 0.0
    %1260 = vmatpush1.msra.mxu0 0.0
    %1261 = vmatprep.subr.mxu0 0.0
    %1262 = vmatpush1.msra.mxu0 0.0
    %1263 = vmatprep.subr.mxu0 0.0
    %1264 = vmatpush1.msra.mxu0 0.0
    %1265 = vmatprep.subr.mxu0 0.0
    %1266 = vmatpush1.msra.mxu0 0.0
    %1267 = vmatprep.subr.mxu0 0.0
    %1268 = vmatpush1.msra.mxu0 0.0
    %1269 = vmatprep.subr.mxu0 0.0
    %1270 = vmatpush1.msra.mxu0 0.0
    %1271 = vmatprep.subr.mxu0 0.0
    %1272 = vmatpush1.msra.mxu0 0.0
    %1273 = vmatprep.subr.mxu0 0.0
    %1274 = vmatpush1.msra.mxu0 0.0
    %1275 = vmatprep.subr.mxu0 0.0
    %1276 = vmatpush1.msra.mxu0 0.0
    %1277 = vmatprep.subr.mxu0 0.0
    %1278 = vmatpush1.msra.mxu0 0.0
    %1279 = vmatprep.subr.mxu0 0.0
    %1280 = vmatpush1.msra.mxu0 0.0
    %1281 = vmatprep.subr.mxu0 0.0
    %1282 = vmatpush1.msra.mxu0 0.0
    %1283 = vmatprep.subr.mxu0 0.0
    %1284 = vmatpush1.msra.mxu0 0.0
    %1285 = vmatprep.subr.mxu0 0.0
    %1286 = vmatpush1.msra.mxu0 0.0
    %1287 = vmatprep.subr.mxu0 0.0
    %1288 = vmatpush1.msra.mxu0 0.0
    %1289 = vmatprep.subr.mxu0 0.0
    %1290 = vmatpush1.msra.mxu0 0.0
    %1291 = vmatprep.subr.mxu0 0.0
    %1292 = vmatpush1.msra.mxu0 0.0
    %1293 = vmatprep.subr.mxu0 0.0
    %1294 = vmatpush1.msra.mxu0 0.0
    %1295 = vmatprep.subr.mxu0 0.0
    %1296 = vmatpush1.msra.mxu0 0.0
    %1297 = vmatprep.subr.mxu0 0.0
    %1298 = vmatpush1.msra.mxu0 0.0
    %1299 = vmatprep.mubr.f32.mxu0 0.0
    %1300 = vmatmul.mubr.f32.gmra.mrb[0].mxu0 %v1233
    %v1301 = vpop.f32.mrb[0].mxu0
    %v1302 = vadd.f32 %v1231, %v1301
    %v1303 = vpop.f32.mrb[0].mxu0
    %1304 = vdwg.mxu0
    %v1305 = vxor.u32 %v1302, 2147483648
    %v1306 = vmul.f32 %v1305, 1.442695
    %v1307 = vpow.pop %v1306
    %v1308 = vadd.f32 %v1307, 1.0
    %v1309 = vrcp.pop %v1308
    %v1310 = vmul.f32 1.0, %v1309
    %v1311 = vmul.f32 %v1310, 2.0
    %v1312 = vsub.f32 %v1311, 1.0
    %v1313 = vmul.f32 %v1310, %v1221
    %1315 = vrot.lane.b32.xlu0 %v1312, 64
    %v1316 = vpop.permute.xlu0 %1315
    %v1318 = vmul.f32 %v1310, %v1316
    %1320 = vrot.lane.b32.xlu0 %v1318, 32
    %v1321 = vpop.permute.xlu0 %1320
    %v1323 = vadd.f32 %v1313, %v1321
    %v1324 = vtanh.pop %v1323
    %1326 = vrot.lane.b32.xlu0 %v1324, 64
    %v1327 = vpop.permute.xlu0 %1326
    %v1329 = vmul.f32 %v1310, %v1327
    %1331 = vrot.lane.b32.xlu0 %v1329, 32
    %v1332 = vpop.permute.xlu0 %1331
    %v1333 = vrot.slane %v1017, 6
    %v1335 = vsel %vm84, %v1332, 0
    %1337 = vmatprep.subr.mxu0 0.0
    %1338 = vmatpush1.msra.mxu0 %v1026
    %1339 = vmatprep.subr.mxu0 0.0
    %1340 = vmatpush1.msra.mxu0 %v1027
    %1341 = vmatprep.subr.mxu0 0.0
    %1342 = vmatpush1.msra.mxu0 %v1028
    %1343 = vmatprep.subr.mxu0 0.0
    %1344 = vmatpush1.msra.mxu0 %v1029
    %1345 = vmatprep.subr.mxu0 0.0
    %1346 = vmatpush1.msra.mxu0 0.0
    %1347 = vmatprep.subr.mxu0 0.0
    %1348 = vmatpush1.msra.mxu0 0.0
    %1349 = vmatprep.subr.mxu0 0.0
    %1350 = vmatpush1.msra.mxu0 0.0
    %1351 = vmatprep.subr.mxu0 0.0
    %1352 = vmatpush1.msra.mxu0 0.0
    %1353 = vmatprep.subr.mxu0 0.0
    %1354 = vmatpush1.msra.mxu0 0.0
    %1355 = vmatprep.subr.mxu0 0.0
    %1356 = vmatpush1.msra.mxu0 0.0
    %1357 = vmatprep.subr.mxu0 0.0
    %1358 = vmatpush1.msra.mxu0 0.0
    %1359 = vmatprep.subr.mxu0 0.0
    %1360 = vmatpush1.msra.mxu0 0.0
    %1361 = vmatprep.subr.mxu0 0.0
    %1362 = vmatpush1.msra.mxu0 0.0
    %1363 = vmatprep.subr.mxu0 0.0
    %1364 = vmatpush1.msra.mxu0 0.0
    %1365 = vmatprep.subr.mxu0 0.0
    %1366 = vmatpush1.msra.mxu0 0.0
    %1367 = vmatprep.subr.mxu0 0.0
    %1368 = vmatpush1.msra.mxu0 0.0
    %1369 = vmatprep.subr.mxu0 0.0
    %1370 = vmatpush1.msra.mxu0 0.0
    %1371 = vmatprep.subr.mxu0 0.0
    %1372 = vmatpush1.msra.mxu0 0.0
    %1373 = vmatprep.subr.mxu0 0.0
    %1374 = vmatpush1.msra.mxu0 0.0
    %1375 = vmatprep.subr.mxu0 0.0
    %1376 = vmatpush1.msra.mxu0 0.0
    %1377 = vmatprep.subr.mxu0 0.0
    %1378 = vmatpush1.msra.mxu0 0.0
    %1379 = vmatprep.subr.mxu0 0.0
    %1380 = vmatpush1.msra.mxu0 0.0
    %1381 = vmatprep.subr.mxu0 0.0
    %1382 = vmatpush1.msra.mxu0 0.0
    %1383 = vmatprep.subr.mxu0 0.0
    %1384 = vmatpush1.msra.mxu0 0.0
    %1385 = vmatprep.subr.mxu0 0.0
    %1386 = vmatpush1.msra.mxu0 0.0
    %1387 = vmatprep.subr.mxu0 0.0
    %1388 = vmatpush1.msra.mxu0 0.0
    %1389 = vmatprep.subr.mxu0 0.0
    %1390 = vmatpush1.msra.mxu0 0.0
    %1391 = vmatprep.subr.mxu0 0.0
    %1392 = vmatpush1.msra.mxu0 0.0
    %1393 = vmatprep.subr.mxu0 0.0
    %1394 = vmatpush1.msra.mxu0 0.0
    %1395 = vmatprep.subr.mxu0 0.0
    %1396 = vmatpush1.msra.mxu0 0.0
    %1397 = vmatprep.subr.mxu0 0.0
    %1398 = vmatpush1.msra.mxu0 0.0
    %1399 = vmatprep.subr.mxu0 0.0
    %1400 = vmatpush1.msra.mxu0 0.0
    %1401 = vmatprep.mubr.f32.mxu0 0.0
    %1402 = vmatmul.mubr.f32.gmra.mrb[0].mxu0 %v1335
    %v1403 = vpop.f32.mrb[0].mxu0
    %v1404 = vadd.f32 %v1333, %v1403
    %v1405 = vpop.f32.mrb[0].mxu0
    %1406 = vdwg.mxu0
    %v1407 = vxor.u32 %v1404, 2147483648
    %v1408 = vmul.f32 %v1407, 1.442695
    %v1409 = vpow.pop %v1408
    %v1410 = vadd.f32 %v1409, 1.0
    %v1411 = vrcp.pop %v1410
    %v1412 = vmul.f32 1.0, %v1411
    %v1413 = vmul.f32 %v1412, 2.0
    %v1414 = vsub.f32 %v1413, 1.0
    %v1415 = vmul.f32 %v1412, %v1323
    %1417 = vrot.lane.b32.xlu0 %v1414, 64
    %v1418 = vpop.permute.xlu0 %1417
    %v1420 = vmul.f32 %v1412, %v1418
    %1422 = vrot.lane.b32.xlu0 %v1420, 32
    %v1423 = vpop.permute.xlu0 %1422
    %v1425 = vadd.f32 %v1415, %v1423
    %v1426 = vtanh.pop %v1425
    %1428 = vrot.lane.b32.xlu0 %v1426, 64
    %v1429 = vpop.permute.xlu0 %1428
    %v1431 = vmul.f32 %v1412, %v1429
    %1433 = vrot.lane.b32.xlu0 %v1431, 32
    %v1434 = vpop.permute.xlu0 %1433
    %v1435 = vsel %vm84, %v1434, 0
    %1437 = vmatprep.subr.mxu0 0.0
    %1438 = vmatpush1.msra.mxu0 %v1026
    %1439 = vmatprep.subr.mxu0 0.0
    %1440 = vmatpush1.msra.mxu0 %v1027
    %1441 = vmatprep.subr.mxu0 0.0
    %1442 = vmatpush1.msra.mxu0 %v1028
    %1443 = vmatprep.subr.mxu0 0.0
    %1444 = vmatpush1.msra.mxu0 %v1029
    %1445 = vmatprep.subr.mxu0 0.0
    %1446 = vmatpush1.msra.mxu0 0.0
    %1447 = vmatprep.subr.mxu0 0.0
    %1448 = vmatpush1.msra.mxu0 0.0
    %1449 = vmatprep.subr.mxu0 0.0
    %1450 = vmatpush1.msra.mxu0 0.0
    %1451 = vmatprep.subr.mxu0 0.0
    %1452 = vmatpush1.msra.mxu0 0.0
    %1453 = vmatprep.subr.mxu0 0.0
    %1454 = vmatpush1.msra.mxu0 0.0
    %1455 = vmatprep.subr.mxu0 0.0
    %1456 = vmatpush1.msra.mxu0 0.0
    %1457 = vmatprep.subr.mxu0 0.0
    %1458 = vmatpush1.msra.mxu0 0.0
    %1459 = vmatprep.subr.mxu0 0.0
    %1460 = vmatpush1.msra.mxu0 0.0
    %1461 = vmatprep.subr.mxu0 0.0
    %1462 = vmatpush1.msra.mxu0 0.0
    %1463 = vmatprep.subr.mxu0 0.0
    %1464 = vmatpush1.msra.mxu0 0.0
    %1465 = vmatprep.subr.mxu0 0.0
    %1466 = vmatpush1.msra.mxu0 0.0
    %1467 = vmatprep.subr.mxu0 0.0
    %1468 = vmatpush1.msra.mxu0 0.0
    %1469 = vmatprep.subr.mxu0 0.0
    %1470 = vmatpush1.msra.mxu0 0.0
    %1471 = vmatprep.subr.mxu0 0.0
    %1472 = vmatpush1.msra.mxu0 0.0
    %1473 = vmatprep.subr.mxu0 0.0
    %1474 = vmatpush1.msra.mxu0 0.0
    %1475 = vmatprep.subr.mxu0 0.0
    %1476 = vmatpush1.msra.mxu0 0.0
    %1477 = vmatprep.subr.mxu0 0.0
    %1478 = vmatpush1.msra.mxu0 0.0
    %1479 = vmatprep.subr.mxu0 0.0
    %1480 = vmatpush1.msra.mxu0 0.0
    %1481 = vmatprep.subr.mxu0 0.0
    %1482 = vmatpush1.msra.mxu0 0.0
    %1483 = vmatprep.subr.mxu0 0.0
    %1484 = vmatpush1.msra.mxu0 0.0
    %1485 = vmatprep.subr.mxu0 0.0
    %1486 = vmatpush1.msra.mxu0 0.0
    %1487 = vmatprep.subr.mxu0 0.0
    %1488 = vmatpush1.msra.mxu0 0.0
    %1489 = vmatprep.subr.mxu0 0.0
    %1490 = vmatpush1.msra.mxu0 0.0
    %1491 = vmatprep.subr.mxu0 0.0
    %1492 = vmatpush1.msra.mxu0 0.0
    %1493 = vmatprep.subr.mxu0 0.0
    %1494 = vmatpush1.msra.mxu0 0.0
    %1495 = vmatprep.subr.mxu0 0.0
    %1496 = vmatpush1.msra.mxu0 0.0
    %1497 = vmatprep.subr.mxu0 0.0
    %1498 = vmatpush1.msra.mxu0 0.0
    %1499 = vmatprep.subr.mxu0 0.0
    %1500 = vmatpush1.msra.mxu0 0.0
    %1501 = vmatprep.mubr.f32.mxu0 0.0
    %1502 = vmatmul.mubr.f32.gmra.mrb[0].mxu0 %v1435
    %v1503 = vpop.f32.mrb[0].mxu0
    %v1504 = vadd.f32 %v1022, %v1503
    %v1505 = vpop.f32.mrb[0].mxu0
    %1506 = vdwg.mxu0
    %v1507 = vxor.u32 %v1504, 2147483648
    %v1508 = vmul.f32 %v1507, 1.442695
    %v1509 = vpow.pop %v1508
    %v1510 = vadd.f32 %v1509, 1.0
    %v1511 = vrcp.pop %v1510
    %v1512 = vmul.f32 1.0, %v1511
    %v1513 = vmul.f32 %v1512, 2.0
    %v1514 = vsub.f32 %v1513, 1.0
    %v1515 = vmul.f32 %v1512, %v1425
    %1517 = vrot.lane.b32.xlu0 %v1514, 64
    %v1518 = vpop.permute.xlu0 %1517
    %v1520 = vmul.f32 %v1512, %v1518
    %1522 = vrot.lane.b32.xlu0 %v1520, 32
    %v1523 = vpop.permute.xlu0 %1522
    %v1525 = vadd.f32 %v1515, %v1523
    %v1526 = vtanh.pop %v1525
    %1528 = vrot.lane.b32.xlu0 %v1526, 64
    %v1529 = vpop.permute.xlu0 %1528
    %v1531 = vmul.f32 %v1512, %v1529
    %1533 = vrot.lane.b32.xlu0 %v1531, 32
    %v1534 = vpop.permute.xlu0 %1533
    %v1536 = vrot.slane %v1022, 2
    %v1538 = vsel %vm84, %v1534, 0
    %1540 = vmatprep.subr.mxu0 0.0
    %1541 = vmatpush1.msra.mxu0 %v1026
    %1542 = vmatprep.subr.mxu0 0.0
    %1543 = vmatpush1.msra.mxu0 %v1027
    %1544 = vmatprep.subr.mxu0 0.0
    %1545 = vmatpush1.msra.mxu0 %v1028
    %1546 = vmatprep.subr.mxu0 0.0
    %1547 = vmatpush1.msra.mxu0 %v1029
    %1548 = vmatprep.subr.mxu0 0.0
    %1549 = vmatpush1.msra.mxu0 0.0
    %1550 = vmatprep.subr.mxu0 0.0
    %1551 = vmatpush1.msra.mxu0 0.0
    %1552 = vmatprep.subr.mxu0 0.0
    %1553 = vmatpush1.msra.mxu0 0.0
    %1554 = vmatprep.subr.mxu0 0.0
    %1555 = vmatpush1.msra.mxu0 0.0
    %1556 = vmatprep.subr.mxu0 0.0
    %1557 = vmatpush1.msra.mxu0 0.0
    %1558 = vmatprep.subr.mxu0 0.0
    %1559 = vmatpush1.msra.mxu0 0.0
    %1560 = vmatprep.subr.mxu0 0.0
    %1561 = vmatpush1.msra.mxu0 0.0
    %1562 = vmatprep.subr.mxu0 0.0
    %1563 = vmatpush1.msra.mxu0 0.0
    %1564 = vmatprep.subr.mxu0 0.0
    %1565 = vmatpush1.msra.mxu0 0.0
    %1566 = vmatprep.subr.mxu0 0.0
    %1567 = vmatpush1.msra.mxu0 0.0
    %1568 = vmatprep.subr.mxu0 0.0
    %1569 = vmatpush1.msra.mxu0 0.0
    %1570 = vmatprep.subr.mxu0 0.0
    %1571 = vmatpush1.msra.mxu0 0.0
    %1572 = vmatprep.subr.mxu0 0.0
    %1573 = vmatpush1.msra.mxu0 0.0
    %1574 = vmatprep.subr.mxu0 0.0
    %1575 = vmatpush1.msra.mxu0 0.0
    %1576 = vmatprep.subr.mxu0 0.0
    %1577 = vmatpush1.msra.mxu0 0.0
    %1578 = vmatprep.subr.mxu0 0.0
    %1579 = vmatpush1.msra.mxu0 0.0
    %1580 = vmatprep.subr.mxu0 0.0
    %1581 = vmatpush1.msra.mxu0 0.0
    %1582 = vmatprep.subr.mxu0 0.0
    %1583 = vmatpush1.msra.mxu0 0.0
    %1584 = vmatprep.subr.mxu0 0.0
    %1585 = vmatpush1.msra.mxu0 0.0
    %1586 = vmatprep.subr.mxu0 0.0
    %1587 = vmatpush1.msra.mxu0 0.0
    %1588 = vmatprep.subr.mxu0 0.0
    %1589 = vmatpush1.msra.mxu0 0.0
    %1590 = vmatprep.subr.mxu0 0.0
    %1591 = vmatpush1.msra.mxu0 0.0
    %1592 = vmatprep.subr.mxu0 0.0
    %1593 = vmatpush1.msra.mxu0 0.0
    %1594 = vmatprep.subr.mxu0 0.0
    %1595 = vmatpush1.msra.mxu0 0.0
    %1596 = vmatprep.subr.mxu0 0.0
    %1597 = vmatpush1.msra.mxu0 0.0
    %1598 = vmatprep.subr.mxu0 0.0
    %1599 = vmatpush1.msra.mxu0 0.0
    %1600 = vmatprep.subr.mxu0 0.0
    %1601 = vmatpush1.msra.mxu0 0.0
    %1602 = vmatprep.subr.mxu0 0.0
    %1603 = vmatpush1.msra.mxu0 0.0
    %1604 = vmatprep.mubr.f32.mxu0 0.0
    %1605 = vmatmul.mubr.f32.gmra.mrb[0].mxu0 %v1538
    %v1606 = vpop.f32.mrb[0].mxu0
    %v1607 = vadd.f32 %v1536, %v1606
    %v1608 = vpop.f32.mrb[0].mxu0
    %1609 = vdwg.mxu0
    %v1610 = vxor.u32 %v1607, 2147483648
    %v1611 = vmul.f32 %v1610, 1.442695
    %v1612 = vpow.pop %v1611
    %v1613 = vadd.f32 %v1612, 1.0
    %v1614 = vrcp.pop %v1613
    %v1615 = vmul.f32 1.0, %v1614
    %v1616 = vmul.f32 %v1615, 2.0
    %v1617 = vsub.f32 %v1616, 1.0
    %v1618 = vmul.f32 %v1615, %v1525
    %1620 = vrot.lane.b32.xlu0 %v1617, 64
    %v1621 = vpop.permute.xlu0 %1620
    %v1623 = vmul.f32 %v1615, %v1621
    %1625 = vrot.lane.b32.xlu0 %v1623, 32
    %v1626 = vpop.permute.xlu0 %1625
    %v1628 = vadd.f32 %v1618, %v1626
    %v1629 = vtanh.pop %v1628
    %1631 = vrot.lane.b32.xlu0 %v1629, 64
    %v1632 = vpop.permute.xlu0 %1631
    %v1634 = vmul.f32 %v1615, %v1632
    %1636 = vrot.lane.b32.xlu0 %v1634, 32
    %v1637 = vpop.permute.xlu0 %1636
    %v1638 = vrot.slane %v1022, 4
    %v1640 = vsel %vm84, %v1637, 0
    %1642 = vmatprep.subr.mxu0 0.0
    %1643 = vmatpush1.msra.mxu0 %v1026
    %1644 = vmatprep.subr.mxu0 0.0
    %1645 = vmatpush1.msra.mxu0 %v1027
    %1646 = vmatprep.subr.mxu0 0.0
    %1647 = vmatpush1.msra.mxu0 %v1028
    %1648 = vmatprep.subr.mxu0 0.0
    %1649 = vmatpush1.msra.mxu0 %v1029
    %1650 = vmatprep.subr.mxu0 0.0
    %1651 = vmatpush1.msra.mxu0 0.0
    %1652 = vmatprep.subr.mxu0 0.0
    %1653 = vmatpush1.msra.mxu0 0.0
    %1654 = vmatprep.subr.mxu0 0.0
    %1655 = vmatpush1.msra.mxu0 0.0
    %1656 = vmatprep.subr.mxu0 0.0
    %1657 = vmatpush1.msra.mxu0 0.0
    %1658 = vmatprep.subr.mxu0 0.0
    %1659 = vmatpush1.msra.mxu0 0.0
    %1660 = vmatprep.subr.mxu0 0.0
    %1661 = vmatpush1.msra.mxu0 0.0
    %1662 = vmatprep.subr.mxu0 0.0
    %1663 = vmatpush1.msra.mxu0 0.0
    %1664 = vmatprep.subr.mxu0 0.0
    %1665 = vmatpush1.msra.mxu0 0.0
    %1666 = vmatprep.subr.mxu0 0.0
    %1667 = vmatpush1.msra.mxu0 0.0
    %1668 = vmatprep.subr.mxu0 0.0
    %1669 = vmatpush1.msra.mxu0 0.0
    %1670 = vmatprep.subr.mxu0 0.0
    %1671 = vmatpush1.msra.mxu0 0.0
    %1672 = vmatprep.subr.mxu0 0.0
    %1673 = vmatpush1.msra.mxu0 0.0
    %1674 = vmatprep.subr.mxu0 0.0
    %1675 = vmatpush1.msra.mxu0 0.0
    %1676 = vmatprep.subr.mxu0 0.0
    %1677 = vmatpush1.msra.mxu0 0.0
    %1678 = vmatprep.subr.mxu0 0.0
    %1679 = vmatpush1.msra.mxu0 0.0
    %1680 = vmatprep.subr.mxu0 0.0
    %1681 = vmatpush1.msra.mxu0 0.0
    %1682 = vmatprep.subr.mxu0 0.0
    %1683 = vmatpush1.msra.mxu0 0.0
    %1684 = vmatprep.subr.mxu0 0.0
    %1685 = vmatpush1.msra.mxu0 0.0
    %1686 = vmatprep.subr.mxu0 0.0
    %1687 = vmatpush1.msra.mxu0 0.0
    %1688 = vmatprep.subr.mxu0 0.0
    %1689 = vmatpush1.msra.mxu0 0.0
    %1690 = vmatprep.subr.mxu0 0.0
    %1691 = vmatpush1.msra.mxu0 0.0
    %1692 = vmatprep.subr.mxu0 0.0
    %1693 = vmatpush1.msra.mxu0 0.0
    %1694 = vmatprep.subr.mxu0 0.0
    %1695 = vmatpush1.msra.mxu0 0.0
    %1696 = vmatprep.subr.mxu0 0.0
    %1697 = vmatpush1.msra.mxu0 0.0
    %1698 = vmatprep.subr.mxu0 0.0
    %1699 = vmatpush1.msra.mxu0 0.0
    %1700 = vmatprep.subr.mxu0 0.0
    %1701 = vmatpush1.msra.mxu0 0.0
    %1702 = vmatprep.subr.mxu0 0.0
    %1703 = vmatpush1.msra.mxu0 0.0
    %1704 = vmatprep.subr.mxu0 0.0
    %1705 = vmatpush1.msra.mxu0 0.0
    %1706 = vmatprep.mubr.f32.mxu0 0.0
    %1707 = vmatmul.mubr.f32.gmra.mrb[0].mxu0 %v1640
    %v1708 = vpop.f32.mrb[0].mxu0
    %v1709 = vadd.f32 %v1638, %v1708
    %v1710 = vpop.f32.mrb[0].mxu0
    %1711 = vdwg.mxu0
    %v1712 = vxor.u32 %v1709, 2147483648
    %v1713 = vmul.f32 %v1712, 1.442695
    %v1714 = vpow.pop %v1713
    %v1715 = vadd.f32 %v1714, 1.0
    %v1716 = vrcp.pop %v1715
    %v1717 = vmul.f32 1.0, %v1716
    %v1718 = vmul.f32 %v1717, 2.0
    %v1719 = vsub.f32 %v1718, 1.0
    %v1720 = vmul.f32 %v1717, %v1628
    %1722 = vrot.lane.b32.xlu0 %v1719, 64
    %v1723 = vpop.permute.xlu0 %1722
    %v1725 = vmul.f32 %v1717, %v1723
    %1727 = vrot.lane.b32.xlu0 %v1725, 32
    %v1728 = vpop.permute.xlu0 %1727
    %v1730 = vadd.f32 %v1720, %v1728
    %v1731 = vtanh.pop %v1730
    %1733 = vrot.lane.b32.xlu0 %v1731, 64
    %v1734 = vpop.permute.xlu0 %1733
    %v1736 = vmul.f32 %v1717, %v1734
    %1738 = vrot.lane.b32.xlu0 %v1736, 32
    %v1739 = vpop.permute.xlu0 %1738
    %v1740 = vrot.slane %v1022, 6
    %v1742 = vsel %vm84, %v1739, 0
    %1744 = vmatprep.subr.mxu0 0.0
    %1745 = vmatpush1.msra.mxu0 %v1026
    %1746 = vmatprep.subr.mxu0 0.0
    %1747 = vmatpush1.msra.mxu0 %v1027
    %1748 = vmatprep.subr.mxu0 0.0
    %1749 = vmatpush1.msra.mxu0 %v1028
    %1750 = vmatprep.subr.mxu0 0.0
    %1751 = vmatpush1.msra.mxu0 %v1029
    %1752 = vmatprep.subr.mxu0 0.0
    %1753 = vmatpush1.msra.mxu0 0.0
    %1754 = vmatprep.subr.mxu0 0.0
    %1755 = vmatpush1.msra.mxu0 0.0
    %1756 = vmatprep.subr.mxu0 0.0
    %1757 = vmatpush1.msra.mxu0 0.0
    %1758 = vmatprep.subr.mxu0 0.0
    %1759 = vmatpush1.msra.mxu0 0.0
    %1760 = vmatprep.subr.mxu0 0.0
    %1761 = vmatpush1.msra.mxu0 0.0
    %1762 = vmatprep.subr.mxu0 0.0
    %1763 = vmatpush1.msra.mxu0 0.0
    %1764 = vmatprep.subr.mxu0 0.0
    %1765 = vmatpush1.msra.mxu0 0.0
    %1766 = vmatprep.subr.mxu0 0.0
    %1767 = vmatpush1.msra.mxu0 0.0
    %1768 = vmatprep.subr.mxu0 0.0
    %1769 = vmatpush1.msra.mxu0 0.0
    %1770 = vmatprep.subr.mxu0 0.0
    %1771 = vmatpush1.msra.mxu0 0.0
    %1772 = vmatprep.subr.mxu0 0.0
    %1773 = vmatpush1.msra.mxu0 0.0
    %1774 = vmatprep.subr.mxu0 0.0
    %1775 = vmatpush1.msra.mxu0 0.0
    %1776 = vmatprep.subr.mxu0 0.0
    %1777 = vmatpush1.msra.mxu0 0.0
    %1778 = vmatprep.subr.mxu0 0.0
    %1779 = vmatpush1.msra.mxu0 0.0
    %1780 = vmatprep.subr.mxu0 0.0
    %1781 = vmatpush1.msra.mxu0 0.0
    %1782 = vmatprep.subr.mxu0 0.0
    %1783 = vmatpush1.msra.mxu0 0.0
    %1784 = vmatprep.subr.mxu0 0.0
    %1785 = vmatpush1.msra.mxu0 0.0
    %1786 = vmatprep.subr.mxu0 0.0
    %1787 = vmatpush1.msra.mxu0 0.0
    %1788 = vmatprep.subr.mxu0 0.0
    %1789 = vmatpush1.msra.mxu0 0.0
    %1790 = vmatprep.subr.mxu0 0.0
    %1791 = vmatpush1.msra.mxu0 0.0
    %1792 = vmatprep.subr.mxu0 0.0
    %1793 = vmatpush1.msra.mxu0 0.0
    %1794 = vmatprep.subr.mxu0 0.0
    %1795 = vmatpush1.msra.mxu0 0.0
    %1796 = vmatprep.subr.mxu0 0.0
    %1797 = vmatpush1.msra.mxu0 0.0
    %1798 = vmatprep.subr.mxu0 0.0
    %1799 = vmatpush1.msra.mxu0 0.0
    %1800 = vmatprep.subr.mxu0 0.0
    %1801 = vmatpush1.msra.mxu0 0.0
    %1802 = vmatprep.subr.mxu0 0.0
    %1803 = vmatpush1.msra.mxu0 0.0
    %1804 = vmatprep.subr.mxu0 0.0
    %1805 = vmatpush1.msra.mxu0 0.0
    %1806 = vmatprep.subr.mxu0 0.0
    %1807 = vmatpush1.msra.mxu0 0.0
    %1808 = vmatprep.mubr.f32.mxu0 0.0
    %1809 = vmatmul.mubr.f32.gmra.mrb[0].mxu0 %v1742
    %v1810 = vpop.f32.mrb[0].mxu0
    %v1811 = vadd.f32 %v1740, %v1810
    %v1812 = vpop.f32.mrb[0].mxu0
    %1813 = vdwg.mxu0
    %v1814 = vxor.u32 %v1811, 2147483648
    %v1815 = vmul.f32 %v1814, 1.442695
    %v1816 = vpow.pop %v1815
    %v1817 = vadd.f32 %v1816, 1.0
    %v1818 = vrcp.pop %v1817
    %v1819 = vmul.f32 1.0, %v1818
    %v1820 = vmul.f32 %v1819, 2.0
    %v1821 = vsub.f32 %v1820, 1.0
    %v1822 = vmul.f32 %v1819, %v1730
    %1824 = vrot.lane.b32.xlu0 %v1821, 64
    %v1825 = vpop.permute.xlu0 %1824
    %v1827 = vmul.f32 %v1819, %v1825
    %1829 = vrot.lane.b32.xlu0 %v1827, 32
    %v1830 = vpop.permute.xlu0 %1829
    %v1832 = vadd.f32 %v1822, %v1830
    %v1833 = vtanh.pop %v1832
    %1835 = vrot.lane.b32.xlu0 %v1833, 64
    %v1836 = vpop.permute.xlu0 %1835
    %v1838 = vmul.f32 %v1819, %v1836
    %v1839 = vld [vmem:[%s5] sm:$0xff]
    %v1840 = vld [vmem:[%s5 + $0x8] sm:$0xff]
    %v1841 = vld [vmem:[%s5 + $0x10] sm:$0xff]
    %v1842 = vld [vmem:[%s5 + $0x18] sm:$0xff]
    %v1843 = vld [vmem:[%s6] sm:$0x1]
    %v1845 = vlaneseq
    %v1846 = vshrl.u32 %v1845, 7
    %v1847 = vsub.s32 0, %v1846
    %v1848 = vrot.slane %v1843, %v1847
    %1851 = vrot.lane.b32.xlu0 %v1838, 32
    %v1852 = vpop.permute.xlu0 %1851
    %v1853 = vsel %vm84, %v1852, 0
    %1855 = vmatprep.subr.mxu0 0.0
    %1856 = vmatpush1.msra.mxu0 %v1839
    %1857 = vmatprep.subr.mxu0 0.0
    %1858 = vmatpush1.msra.mxu0 %v1840
    %1859 = vmatprep.subr.mxu0 0.0
    %1860 = vmatpush1.msra.mxu0 %v1841
    %1861 = vmatprep.subr.mxu0 0.0
    %1862 = vmatpush1.msra.mxu0 %v1842
    %1863 = vmatprep.subr.mxu0 0.0
    %1864 = vmatpush1.msra.mxu0 0.0
    %1865 = vmatprep.subr.mxu0 0.0
    %1866 = vmatpush1.msra.mxu0 0.0
    %1867 = vmatprep.subr.mxu0 0.0
    %1868 = vmatpush1.msra.mxu0 0.0
    %1869 = vmatprep.subr.mxu0 0.0
    %1870 = vmatpush1.msra.mxu0 0.0
    %1871 = vmatprep.subr.mxu0 0.0
    %1872 = vmatpush1.msra.mxu0 0.0
    %1873 = vmatprep.subr.mxu0 0.0
    %1874 = vmatpush1.msra.mxu0 0.0
    %1875 = vmatprep.subr.mxu0 0.0
    %1876 = vmatpush1.msra.mxu0 0.0
    %1877 = vmatprep.subr.mxu0 0.0
    %1878 = vmatpush1.msra.mxu0 0.0
    %1879 = vmatprep.subr.mxu0 0.0
    %1880 = vmatpush1.msra.mxu0 0.0
    %1881 = vmatprep.subr.mxu0 0.0
    %1882 = vmatpush1.msra.mxu0 0.0
    %1883 = vmatprep.subr.mxu0 0.0
    %1884 = vmatpush1.msra.mxu0 0.0
    %1885 = vmatprep.subr.mxu0 0.0
    %1886 = vmatpush1.msra.mxu0 0.0
    %1887 = vmatprep.subr.mxu0 0.0
    %1888 = vmatpush1.msra.mxu0 0.0
    %1889 = vmatprep.subr.mxu0 0.0
    %1890 = vmatpush1.msra.mxu0 0.0
    %1891 = vmatprep.subr.mxu0 0.0
    %1892 = vmatpush1.msra.mxu0 0.0
    %1893 = vmatprep.subr.mxu0 0.0
    %1894 = vmatpush1.msra.mxu0 0.0
    %1895 = vmatprep.subr.mxu0 0.0
    %1896 = vmatpush1.msra.mxu0 0.0
    %1897 = vmatprep.subr.mxu0 0.0
    %1898 = vmatpush1.msra.mxu0 0.0
    %1899 = vmatprep.subr.mxu0 0.0
    %1900 = vmatpush1.msra.mxu0 0.0
    %1901 = vmatprep.subr.mxu0 0.0
    %1902 = vmatpush1.msra.mxu0 0.0
    %1903 = vmatprep.subr.mxu0 0.0
    %1904 = vmatpush1.msra.mxu0 0.0
    %1905 = vmatprep.subr.mxu0 0.0
    %1906 = vmatpush1.msra.mxu0 0.0
    %1907 = vmatprep.subr.mxu0 0.0
    %1908 = vmatpush1.msra.mxu0 0.0
    %1909 = vmatprep.subr.mxu0 0.0
    %1910 = vmatpush1.msra.mxu0 0.0
    %1911 = vmatprep.subr.mxu0 0.0
    %1912 = vmatpush1.msra.mxu0 0.0
    %1913 = vmatprep.subr.mxu0 0.0
    %1914 = vmatpush1.msra.mxu0 0.0
    %1915 = vmatprep.subr.mxu0 0.0
    %1916 = vmatpush1.msra.mxu0 0.0
    %1917 = vmatprep.subr.mxu0 0.0
    %1918 = vmatpush1.msra.mxu0 0.0
    %1919 = vmatprep.mubr.f32.mxu0 0.0
    %1920 = vmatmul.mubr.f32.gmra.mrb[0].mxu0 %v1853
    %v1921 = vpop.f32.mrb[0].mxu0
    %v1922 = vadd.f32 %v1848, %v1921
    %v1923 = vpop.f32.mrb[0].mxu0
    %1924 = vdwg.mxu0
    %vm1925 = vcmask 25600
    %1926 = vst.msk [vmem:[#allocation6] sm:$0x3] %vm1925, %v1922
    // Predicated region
    $region34: #{tpu_custom_call.1} parent=1 // pred_check
      _
    $region35: #{tpu_custom_call.1} parent=1 // pred_check_branch
      %1928 = sbr.rel (0) target = $region37
    $region36: #{tpu_custom_call.1} parent=1 // pred_region
      %s1930 = ssub.s32 32, 32
      %1931 = vsyncadd [#allocation5], %s1930
      %s1933 = sshll.u32 [#allocation6], 4
      %s1934 = int_to_ptr.vmem [resolvable:$true] %s1933
      %1936 = dma.vmem_to_hbm [thread:$0]  %s1934, 32, %s7, [#allocation5]
    $region37: #{tpu_custom_call.1} parent=1 // pred_fallthru
      _
    // Predicated region
    $region38: #{tpu_custom_call.1} parent=1 // pred_check
      _
    $region39: #{tpu_custom_call.1} parent=1 // pred_check_branch
      %1938 = sbr.rel (0) target = $region41
    $region40: #{tpu_custom_call.1} parent=1 // pred_region
      %1939 = dma.done [#allocation5], 32
    $region41: #{tpu_custom_call.1} parent=1 // pred_fallthru
      _
    %1940 = vsyncpa [#allocation4], 1
    %1941 = vsyncpa [#allocation5], 1

</llo_original>
